<compile_context>
chip_gen: v7x
topology: tpu7x:2x2x1
jax: 0.10.0
libtpu: 0.0.40
codegen_flags: <defaults>
</compile_context>

<pallas_src>
import math
import functools

import jax
import jax.numpy as jnp
from jax import lax
from jax.experimental import pallas as pl
from jax.experimental.pallas import tpu as pltpu


# ------------------------------ Pallas kernel -------------------------------


def fused_mha_kernel(q_ref, k_ref, v_ref,
                     wq_ref, bq_ref, wk_ref, bk_ref,
                     wv_ref, bv_ref, wo_ref, bo_ref,
                     o_ref, *, num_heads, scale, compute_dtype):
    """One batch element: projections + per-head attention + output projection."""
    f32 = jnp.float32
    cdt = compute_dtype

    xq = q_ref[0].astype(cdt)            # (S, d_model)
    xk = k_ref[0].astype(cdt)
    xv = v_ref[0].astype(cdt)

    # Projections: weights are already (d_in, d_out) -> plain x @ W, no transpose.
    q = jnp.dot(xq, wq_ref[...].astype(cdt), preferred_element_type=f32) + bq_ref[...]
    k = jnp.dot(xk, wk_ref[...].astype(cdt), preferred_element_type=f32) + bk_ref[...]
    v = jnp.dot(xv, wv_ref[...].astype(cdt), preferred_element_type=f32) + bv_ref[...]

    S, d_model = q.shape
    d_k = d_model // num_heads

    # Contract the LAST dim of both operands: qh @ kh^T without an in-kernel transpose.
    dn = (((1,), (1,)), ((), ()))

    acc = jnp.zeros((S, d_model), f32)
    for hd in range(num_heads):          # static unroll over heads
        lo = hd * d_k
        qh = q[:, lo:lo + d_k]           # (S, d_k) static lane slices
        kh = k[:, lo:lo + d_k]
        vh = v[:, lo:lo + d_k]

        scores = lax.dot_general(qh.astype(cdt), kh.astype(cdt), dn,
                                 preferred_element_type=f32) * scale     # (S, S)

        # Softmax in f32 (max-subtracted); reciprocal on the EUP slot (~free).
        m = jnp.max(scores, axis=-1, keepdims=True)
        p = jnp.exp(scores - m)
        p = p * pl.reciprocal(jnp.sum(p, axis=-1, keepdims=True), approx=True)

        ctx_h = jnp.dot(p.astype(cdt), vh.astype(cdt),
                        preferred_element_type=f32)                      # (S, d_k)

        # Head merge folded into the output projection: sum_h ctx_h @ Wo[rows of head h].
        acc = acc + jnp.dot(ctx_h.astype(cdt),
                            wo_ref[lo:lo + d_k, :].astype(cdt),
                            preferred_element_type=f32)                  # (S, d_model)

    out = acc + bo_ref[...]
    o_ref[0] = out.astype(o_ref.dtype)


# -------------------------------- wrapper ------------------------------------


def multi_headed_attention(query, key, value, params, h, compute_dtype=None):
    """Forward pass of MultiHeadedAttention (mask=None, eval-mode dropout).

    query/key/value: (B, S, d_model).  params: w0..w3 (d_out, d_in) PyTorch layout,
    b0..b3 (d_model,).  compute_dtype: optional MXU operand dtype (e.g. bf16 on
    v6e/v7x); defaults to the input dtype.  Accumulation/softmax always f32.
    """
    B, S, d_model = query.shape
    assert d_model % h == 0
    d_k = d_model // h
    if compute_dtype is None:
        compute_dtype = query.dtype

    # One-time host-side layout fix: nn.Linear W is (d_out, d_in) -> (d_in, d_out),
    # biases -> (1, d_model), so the kernel never transposes operands.
    wts = [params[f"w{i}"].T for i in range(4)]
    bss = [params[f"b{i}"].reshape(1, d_model) for i in range(4)]

    kern = functools.partial(fused_mha_kernel,
                             num_heads=h,
                             scale=1.0 / math.sqrt(d_k),
                             compute_dtype=jnp.dtype(compute_dtype))

    x_spec = pl.BlockSpec((1, S, d_model), lambda b: (b, 0, 0))
    w_spec = pl.BlockSpec((d_model, d_model), lambda b: (0, 0))
    b_spec = pl.BlockSpec((1, d_model), lambda b: (0, 0))

    return pl.pallas_call(
        kern,
        out_shape=jax.ShapeDtypeStruct((B, S, d_model), query.dtype),
        grid=(B,),
        in_specs=[x_spec, x_spec, x_spec,
                  w_spec, b_spec,   # Wq, bq
                  w_spec, b_spec,   # Wk, bk
                  w_spec, b_spec,   # Wv, bv
                  w_spec, b_spec],  # Wo, bo
        out_specs=x_spec,
        compiler_params=pltpu.CompilerParams(
            dimension_semantics=("parallel",)),   # shards batch across TCs on v7x
    )(query, key, value,
      wts[0], bss[0], wts[1], bss[1], wts[2], bss[2], wts[3], bss[3])


# ------------------------- reference (pure JAX) -------------------------------


def reference_mha(query, key, value, params, h):
    B, S, d_model = query.shape
    d_k = d_model // h

    def lin(x, w, b):
        return x @ w.T + b

    def split(x):
        return x.reshape(B, S, h, d_k).transpose(0, 2, 1, 3)

    q = split(lin(query, params["w0"], params["b0"]))
    k = split(lin(key, params["w1"], params["b1"]))
    v = split(lin(value, params["w2"], params["b2"]))
    scores = jnp.einsum("bhqd,bhkd->bhqk", q, k) / math.sqrt(d_k)
    p = jax.nn.softmax(scores, axis=-1)
    x = jnp.einsum("bhqk,bhkd->bhqd", p, v)
    x = x.transpose(0, 2, 1, 3).reshape(B, S, d_model)
    return lin(x, params["w3"], params["b3"])


# ---------------------------------- main --------------------------------------


if __name__ == "__main__":
    B, S, d_model, h = 2, 8, 32, 4

    key0 = jax.random.PRNGKey(0)
    keys = jax.random.split(key0, 12)

    bound = 1.0 / math.sqrt(d_model)
    params = {}
    for i in range(4):  # 4 nn.Linear(d_model, d_model) layers
        params[f"w{i}"] = jax.random.uniform(
            keys[2 * i], (d_model, d_model), jnp.float32, -bound, bound)
        params[f"b{i}"] = jax.random.uniform(
            keys[2 * i + 1], (d_model,), jnp.float32, -bound, bound)

    query = jax.random.normal(keys[8], (B, S, d_model), jnp.float32)
    key_in = jax.random.normal(keys[9], (B, S, d_model), jnp.float32)
    value = jax.random.normal(keys[10], (B, S, d_model), jnp.float32)

    out = multi_headed_attention(query, key_in, value, params, h)
    out = jax.block_until_ready(out)

    ref = reference_mha(query, key_in, value, params, h)
    assert out.shape == (B, S, d_model)
    assert out.dtype == query.dtype
    # Tolerance loosened slightly vs. exact-reciprocal version because the
    # softmax denominator uses the hardware approximate reciprocal (EUP vrcp).
    assert jnp.allclose(out, ref, atol=2e-3, rtol=2e-3), "mismatch vs reference"

    print("KERNEL_OK")
</pallas_src>

<mosaic_0001>
module attributes {stable_mosaic.version = 11 : i64} {
  func.func @fused_mha_kernel(%arg0: i32, %arg1: memref<1x8x32xf32, #tpu.memory_space<vmem>>, %arg2: memref<1x8x32xf32, #tpu.memory_space<vmem>>, %arg3: memref<1x8x32xf32, #tpu.memory_space<vmem>>, %arg4: memref<32x32xf32, #tpu.memory_space<vmem>>, %arg5: memref<1x32xf32, #tpu.memory_space<vmem>>, %arg6: memref<32x32xf32, #tpu.memory_space<vmem>>, %arg7: memref<1x32xf32, #tpu.memory_space<vmem>>, %arg8: memref<32x32xf32, #tpu.memory_space<vmem>>, %arg9: memref<1x32xf32, #tpu.memory_space<vmem>>, %arg10: memref<32x32xf32, #tpu.memory_space<vmem>>, %arg11: memref<1x32xf32, #tpu.memory_space<vmem>>, %arg12: memref<1x8x32xf32, #tpu.memory_space<vmem>>) attributes {dimension_semantics = [#tpu.dimension_semantics<parallel>], iteration_bounds = array<i64: 2>, scalar_prefetch = 0 : i64, scratch_operands = 0 : i64, tpu.core_type = #tpu.core_type<tc>, window_params = [{transform_indices = @transform_0, window_bounds = array<i64: 1, 8, 32>}, {transform_indices = @transform_1, window_bounds = array<i64: 1, 8, 32>}, {transform_indices = @transform_2, window_bounds = array<i64: 1, 8, 32>}, {pipeline_mode = #tpu.pipeline_mode<synchronous>, transform_indices = @transform_3, window_bounds = array<i64: 32, 32>}, {pipeline_mode = #tpu.pipeline_mode<synchronous>, transform_indices = @transform_4, window_bounds = array<i64: 1, 32>}, {pipeline_mode = #tpu.pipeline_mode<synchronous>, transform_indices = @transform_5, window_bounds = array<i64: 32, 32>}, {pipeline_mode = #tpu.pipeline_mode<synchronous>, transform_indices = @transform_6, window_bounds = array<i64: 1, 32>}, {pipeline_mode = #tpu.pipeline_mode<synchronous>, transform_indices = @transform_7, window_bounds = array<i64: 32, 32>}, {pipeline_mode = #tpu.pipeline_mode<synchronous>, transform_indices = @transform_8, window_bounds = array<i64: 1, 32>}, {pipeline_mode = #tpu.pipeline_mode<synchronous>, transform_indices = @transform_9, window_bounds = array<i64: 32, 32>}, {pipeline_mode = #tpu.pipeline_mode<synchronous>, transform_indices = @transform_10, window_bounds = array<i64: 1, 32>}, {transform_indices = @transform_11, window_bounds = array<i64: 1, 8, 32>}]} {
    %c0 = arith.constant 0 : index
    %c0_0 = arith.constant 0 : index
    %c0_1 = arith.constant 0 : index
    %0 = vector.load %arg1[%c0, %c0_0, %c0_1] : memref<1x8x32xf32, #tpu.memory_space<vmem>>, vector<1x8x32xf32>
    %1 = vector.shape_cast %0 : vector<1x8x32xf32> to vector<8x32xf32>
    %c0_2 = arith.constant 0 : index
    %c0_3 = arith.constant 0 : index
    %c0_4 = arith.constant 0 : index
    %2 = vector.load %arg2[%c0_2, %c0_3, %c0_4] : memref<1x8x32xf32, #tpu.memory_space<vmem>>, vector<1x8x32xf32>
    %3 = vector.shape_cast %2 : vector<1x8x32xf32> to vector<8x32xf32>
    %c0_5 = arith.constant 0 : index
    %c0_6 = arith.constant 0 : index
    %c0_7 = arith.constant 0 : index
    %4 = vector.load %arg3[%c0_5, %c0_6, %c0_7] : memref<1x8x32xf32, #tpu.memory_space<vmem>>, vector<1x8x32xf32>
    %5 = vector.shape_cast %4 : vector<1x8x32xf32> to vector<8x32xf32>
    %c0_8 = arith.constant 0 : index
    %c0_9 = arith.constant 0 : index
    %6 = vector.load %arg4[%c0_8, %c0_9] : memref<32x32xf32, #tpu.memory_space<vmem>>, vector<32x32xf32>
    %cst = arith.constant dense<0.000000e+00> : vector<8x32xf32>
    %7 = tpu.matmul %1, %6, %cst {dimension_numbers = #tpu.dot_dimension_numbers<[1], [0], [0], [1], [0, 0, 1, 1], [], []>} : vector<8x32xf32>, vector<32x32xf32>, vector<8x32xf32> -> vector<8x32xf32>
    %c0_10 = arith.constant 0 : index
    %c0_11 = arith.constant 0 : index
    %8 = vector.load %arg5[%c0_10, %c0_11] : memref<1x32xf32, #tpu.memory_space<vmem>>, vector<1x32xf32>
    %9 = vector.broadcast %8 : vector<1x32xf32> to vector<8x32xf32>
    %10 = arith.addf %7, %9 : vector<8x32xf32>
    %c0_12 = arith.constant 0 : index
    %c0_13 = arith.constant 0 : index
    %11 = vector.load %arg6[%c0_12, %c0_13] : memref<32x32xf32, #tpu.memory_space<vmem>>, vector<32x32xf32>
    %cst_14 = arith.constant dense<0.000000e+00> : vector<8x32xf32>
    %12 = tpu.matmul %3, %11, %cst_14 {dimension_numbers = #tpu.dot_dimension_numbers<[1], [0], [0], [1], [0, 0, 1, 1], [], []>} : vector<8x32xf32>, vector<32x32xf32>, vector<8x32xf32> -> vector<8x32xf32>
    %c0_15 = arith.constant 0 : index
    %c0_16 = arith.constant 0 : index
    %13 = vector.load %arg7[%c0_15, %c0_16] : memref<1x32xf32, #tpu.memory_space<vmem>>, vector<1x32xf32>
    %14 = vector.broadcast %13 : vector<1x32xf32> to vector<8x32xf32>
    %15 = arith.addf %12, %14 : vector<8x32xf32>
    %c0_17 = arith.constant 0 : index
    %c0_18 = arith.constant 0 : index
    %16 = vector.load %arg8[%c0_17, %c0_18] : memref<32x32xf32, #tpu.memory_space<vmem>>, vector<32x32xf32>
    %cst_19 = arith.constant dense<0.000000e+00> : vector<8x32xf32>
    %17 = tpu.matmul %5, %16, %cst_19 {dimension_numbers = #tpu.dot_dimension_numbers<[1], [0], [0], [1], [0, 0, 1, 1], [], []>} : vector<8x32xf32>, vector<32x32xf32>, vector<8x32xf32> -> vector<8x32xf32>
    %c0_20 = arith.constant 0 : index
    %c0_21 = arith.constant 0 : index
    %18 = vector.load %arg9[%c0_20, %c0_21] : memref<1x32xf32, #tpu.memory_space<vmem>>, vector<1x32xf32>
    %19 = vector.broadcast %18 : vector<1x32xf32> to vector<8x32xf32>
    %20 = arith.addf %17, %19 : vector<8x32xf32>
    %cst_22 = arith.constant 0.000000e+00 : f32
    %21 = vector.broadcast %cst_22 : f32 to vector<8x32xf32>
    %22 = vector.extract_strided_slice %10 {offsets = [0, 0], sizes = [8, 8], strides = [1, 1]} : vector<8x32xf32> to vector<8x8xf32>
    %23 = vector.extract_strided_slice %15 {offsets = [0, 0], sizes = [8, 8], strides = [1, 1]} : vector<8x32xf32> to vector<8x8xf32>
    %24 = vector.extract_strided_slice %20 {offsets = [0, 0], sizes = [8, 8], strides = [1, 1]} : vector<8x32xf32> to vector<8x8xf32>
    %cst_23 = arith.constant dense<0.000000e+00> : vector<8x8xf32>
    %25 = tpu.matmul %22, %23, %cst_23 {dimension_numbers = #tpu.dot_dimension_numbers<[1], [1], [0], [0], [0, 0, 1, 0], [], []>} : vector<8x8xf32>, vector<8x8xf32>, vector<8x8xf32> -> vector<8x8xf32>
    %cst_24 = arith.constant 0.353553385 : f32
    %26 = vector.broadcast %cst_24 : f32 to vector<8x8xf32>
    %27 = arith.mulf %25, %26 : vector<8x8xf32>
    %cst_25 = arith.constant dense<0xFF800000> : vector<8xf32>
    %28 = vector.multi_reduction <maximumf>, %27, %cst_25 [1] : vector<8x8xf32> to vector<8xf32>
    %29 = vector.shape_cast %28 : vector<8xf32> to vector<8x1xf32>
    %30 = vector.broadcast %29 : vector<8x1xf32> to vector<8x8xf32>
    %31 = arith.subf %27, %30 : vector<8x8xf32>
    %32 = math.exp %31 : vector<8x8xf32>
    %cst_26 = arith.constant dense<0.000000e+00> : vector<8xf32>
    %33 = vector.multi_reduction <add>, %32, %cst_26 [1] : vector<8x8xf32> to vector<8xf32>
    %34 = vector.shape_cast %33 : vector<8xf32> to vector<8x1xf32>
    %35 = tpu.reciprocal %34 {approx = true} : vector<8x1xf32> -> vector<8x1xf32>
    %36 = vector.broadcast %35 : vector<8x1xf32> to vector<8x8xf32>
    %37 = arith.mulf %32, %36 : vector<8x8xf32>
    %cst_27 = arith.constant dense<0.000000e+00> : vector<8x8xf32>
    %38 = tpu.matmul %37, %24, %cst_27 {dimension_numbers = #tpu.dot_dimension_numbers<[1], [0], [0], [1], [0, 0, 1, 1], [], []>} : vector<8x8xf32>, vector<8x8xf32>, vector<8x8xf32> -> vector<8x8xf32>
    %c0_28 = arith.constant 0 : index
    %c0_29 = arith.constant 0 : index
    %39 = vector.load %arg10[%c0_28, %c0_29] : memref<32x32xf32, #tpu.memory_space<vmem>>, vector<8x32xf32>
    %cst_30 = arith.constant dense<0.000000e+00> : vector<8x32xf32>
    %40 = tpu.matmul %38, %39, %cst_30 {dimension_numbers = #tpu.dot_dimension_numbers<[1], [0], [0], [1], [0, 0, 1, 1], [], []>} : vector<8x8xf32>, vector<8x32xf32>, vector<8x32xf32> -> vector<8x32xf32>
    %41 = arith.addf %21, %40 : vector<8x32xf32>
    %42 = vector.extract_strided_slice %10 {offsets = [0, 8], sizes = [8, 8], strides = [1, 1]} : vector<8x32xf32> to vector<8x8xf32>
    %43 = vector.extract_strided_slice %15 {offsets = [0, 8], sizes = [8, 8], strides = [1, 1]} : vector<8x32xf32> to vector<8x8xf32>
    %44 = vector.extract_strided_slice %20 {offsets = [0, 8], sizes = [8, 8], strides = [1, 1]} : vector<8x32xf32> to vector<8x8xf32>
    %cst_31 = arith.constant dense<0.000000e+00> : vector<8x8xf32>
    %45 = tpu.matmul %42, %43, %cst_31 {dimension_numbers = #tpu.dot_dimension_numbers<[1], [1], [0], [0], [0, 0, 1, 0], [], []>} : vector<8x8xf32>, vector<8x8xf32>, vector<8x8xf32> -> vector<8x8xf32>
    %cst_32 = arith.constant 0.353553385 : f32
    %46 = vector.broadcast %cst_32 : f32 to vector<8x8xf32>
    %47 = arith.mulf %45, %46 : vector<8x8xf32>
    %cst_33 = arith.constant dense<0xFF800000> : vector<8xf32>
    %48 = vector.multi_reduction <maximumf>, %47, %cst_33 [1] : vector<8x8xf32> to vector<8xf32>
    %49 = vector.shape_cast %48 : vector<8xf32> to vector<8x1xf32>
    %50 = vector.broadcast %49 : vector<8x1xf32> to vector<8x8xf32>
    %51 = arith.subf %47, %50 : vector<8x8xf32>
    %52 = math.exp %51 : vector<8x8xf32>
    %cst_34 = arith.constant dense<0.000000e+00> : vector<8xf32>
    %53 = vector.multi_reduction <add>, %52, %cst_34 [1] : vector<8x8xf32> to vector<8xf32>
    %54 = vector.shape_cast %53 : vector<8xf32> to vector<8x1xf32>
    %55 = tpu.reciprocal %54 {approx = true} : vector<8x1xf32> -> vector<8x1xf32>
    %56 = vector.broadcast %55 : vector<8x1xf32> to vector<8x8xf32>
    %57 = arith.mulf %52, %56 : vector<8x8xf32>
    %cst_35 = arith.constant dense<0.000000e+00> : vector<8x8xf32>
    %58 = tpu.matmul %57, %44, %cst_35 {dimension_numbers = #tpu.dot_dimension_numbers<[1], [0], [0], [1], [0, 0, 1, 1], [], []>} : vector<8x8xf32>, vector<8x8xf32>, vector<8x8xf32> -> vector<8x8xf32>
    %c8 = arith.constant 8 : index
    %c0_36 = arith.constant 0 : index
    %59 = vector.load %arg10[%c8, %c0_36] : memref<32x32xf32, #tpu.memory_space<vmem>>, vector<8x32xf32>
    %cst_37 = arith.constant dense<0.000000e+00> : vector<8x32xf32>
    %60 = tpu.matmul %58, %59, %cst_37 {dimension_numbers = #tpu.dot_dimension_numbers<[1], [0], [0], [1], [0, 0, 1, 1], [], []>} : vector<8x8xf32>, vector<8x32xf32>, vector<8x32xf32> -> vector<8x32xf32>
    %61 = arith.addf %41, %60 : vector<8x32xf32>
    %62 = vector.extract_strided_slice %10 {offsets = [0, 16], sizes = [8, 8], strides = [1, 1]} : vector<8x32xf32> to vector<8x8xf32>
    %63 = vector.extract_strided_slice %15 {offsets = [0, 16], sizes = [8, 8], strides = [1, 1]} : vector<8x32xf32> to vector<8x8xf32>
    %64 = vector.extract_strided_slice %20 {offsets = [0, 16], sizes = [8, 8], strides = [1, 1]} : vector<8x32xf32> to vector<8x8xf32>
    %cst_38 = arith.constant dense<0.000000e+00> : vector<8x8xf32>
    %65 = tpu.matmul %62, %63, %cst_38 {dimension_numbers = #tpu.dot_dimension_numbers<[1], [1], [0], [0], [0, 0, 1, 0], [], []>} : vector<8x8xf32>, vector<8x8xf32>, vector<8x8xf32> -> vector<8x8xf32>
    %cst_39 = arith.constant 0.353553385 : f32
    %66 = vector.broadcast %cst_39 : f32 to vector<8x8xf32>
    %67 = arith.mulf %65, %66 : vector<8x8xf32>
    %cst_40 = arith.constant dense<0xFF800000> : vector<8xf32>
    %68 = vector.multi_reduction <maximumf>, %67, %cst_40 [1] : vector<8x8xf32> to vector<8xf32>
    %69 = vector.shape_cast %68 : vector<8xf32> to vector<8x1xf32>
    %70 = vector.broadcast %69 : vector<8x1xf32> to vector<8x8xf32>
    %71 = arith.subf %67, %70 : vector<8x8xf32>
    %72 = math.exp %71 : vector<8x8xf32>
    %cst_41 = arith.constant dense<0.000000e+00> : vector<8xf32>
    %73 = vector.multi_reduction <add>, %72, %cst_41 [1] : vector<8x8xf32> to vector<8xf32>
    %74 = vector.shape_cast %73 : vector<8xf32> to vector<8x1xf32>
    %75 = tpu.reciprocal %74 {approx = true} : vector<8x1xf32> -> vector<8x1xf32>
    %76 = vector.broadcast %75 : vector<8x1xf32> to vector<8x8xf32>
    %77 = arith.mulf %72, %76 : vector<8x8xf32>
    %cst_42 = arith.constant dense<0.000000e+00> : vector<8x8xf32>
    %78 = tpu.matmul %77, %64, %cst_42 {dimension_numbers = #tpu.dot_dimension_numbers<[1], [0], [0], [1], [0, 0, 1, 1], [], []>} : vector<8x8xf32>, vector<8x8xf32>, vector<8x8xf32> -> vector<8x8xf32>
    %c16 = arith.constant 16 : index
    %c0_43 = arith.constant 0 : index
    %79 = vector.load %arg10[%c16, %c0_43] : memref<32x32xf32, #tpu.memory_space<vmem>>, vector<8x32xf32>
    %cst_44 = arith.constant dense<0.000000e+00> : vector<8x32xf32>
    %80 = tpu.matmul %78, %79, %cst_44 {dimension_numbers = #tpu.dot_dimension_numbers<[1], [0], [0], [1], [0, 0, 1, 1], [], []>} : vector<8x8xf32>, vector<8x32xf32>, vector<8x32xf32> -> vector<8x32xf32>
    %81 = arith.addf %61, %80 : vector<8x32xf32>
    %82 = vector.extract_strided_slice %10 {offsets = [0, 24], sizes = [8, 8], strides = [1, 1]} : vector<8x32xf32> to vector<8x8xf32>
    %83 = vector.extract_strided_slice %15 {offsets = [0, 24], sizes = [8, 8], strides = [1, 1]} : vector<8x32xf32> to vector<8x8xf32>
    %84 = vector.extract_strided_slice %20 {offsets = [0, 24], sizes = [8, 8], strides = [1, 1]} : vector<8x32xf32> to vector<8x8xf32>
    %cst_45 = arith.constant dense<0.000000e+00> : vector<8x8xf32>
    %85 = tpu.matmul %82, %83, %cst_45 {dimension_numbers = #tpu.dot_dimension_numbers<[1], [1], [0], [0], [0, 0, 1, 0], [], []>} : vector<8x8xf32>, vector<8x8xf32>, vector<8x8xf32> -> vector<8x8xf32>
    %cst_46 = arith.constant 0.353553385 : f32
    %86 = vector.broadcast %cst_46 : f32 to vector<8x8xf32>
    %87 = arith.mulf %85, %86 : vector<8x8xf32>
    %cst_47 = arith.constant dense<0xFF800000> : vector<8xf32>
    %88 = vector.multi_reduction <maximumf>, %87, %cst_47 [1] : vector<8x8xf32> to vector<8xf32>
    %89 = vector.shape_cast %88 : vector<8xf32> to vector<8x1xf32>
    %90 = vector.broadcast %89 : vector<8x1xf32> to vector<8x8xf32>
    %91 = arith.subf %87, %90 : vector<8x8xf32>
    %92 = math.exp %91 : vector<8x8xf32>
    %cst_48 = arith.constant dense<0.000000e+00> : vector<8xf32>
    %93 = vector.multi_reduction <add>, %92, %cst_48 [1] : vector<8x8xf32> to vector<8xf32>
    %94 = vector.shape_cast %93 : vector<8xf32> to vector<8x1xf32>
    %95 = tpu.reciprocal %94 {approx = true} : vector<8x1xf32> -> vector<8x1xf32>
    %96 = vector.broadcast %95 : vector<8x1xf32> to vector<8x8xf32>
    %97 = arith.mulf %92, %96 : vector<8x8xf32>
    %cst_49 = arith.constant dense<0.000000e+00> : vector<8x8xf32>
    %98 = tpu.matmul %97, %84, %cst_49 {dimension_numbers = #tpu.dot_dimension_numbers<[1], [0], [0], [1], [0, 0, 1, 1], [], []>} : vector<8x8xf32>, vector<8x8xf32>, vector<8x8xf32> -> vector<8x8xf32>
    %c24 = arith.constant 24 : index
    %c0_50 = arith.constant 0 : index
    %99 = vector.load %arg10[%c24, %c0_50] : memref<32x32xf32, #tpu.memory_space<vmem>>, vector<8x32xf32>
    %cst_51 = arith.constant dense<0.000000e+00> : vector<8x32xf32>
    %100 = tpu.matmul %98, %99, %cst_51 {dimension_numbers = #tpu.dot_dimension_numbers<[1], [0], [0], [1], [0, 0, 1, 1], [], []>} : vector<8x8xf32>, vector<8x32xf32>, vector<8x32xf32> -> vector<8x32xf32>
    %101 = arith.addf %81, %100 : vector<8x32xf32>
    %c0_52 = arith.constant 0 : index
    %c0_53 = arith.constant 0 : index
    %102 = vector.load %arg11[%c0_52, %c0_53] : memref<1x32xf32, #tpu.memory_space<vmem>>, vector<1x32xf32>
    %103 = vector.broadcast %102 : vector<1x32xf32> to vector<8x32xf32>
    %104 = arith.addf %101, %103 : vector<8x32xf32>
    %c0_54 = arith.constant 0 : index
    %c0_55 = arith.constant 0 : index
    %c0_56 = arith.constant 0 : index
    %105 = vector.load %arg12[%c0_54, %c0_55, %c0_56] : memref<1x8x32xf32, #tpu.memory_space<vmem>>, vector<1x8x32xf32>
    %106 = vector.shape_cast %105 : vector<1x8x32xf32> to vector<8x32xf32>
    %107 = vector.shape_cast %104 : vector<8x32xf32> to vector<1x8x32xf32>
    tpu.vector_store %arg12[%c0_54, %c0_55, %c0_56], %107 {strides = array<i32>} : memref<1x8x32xf32, #tpu.memory_space<vmem>>, vector<1x8x32xf32>,
    return
  }
  func.func @transform_0(%arg0: i32) -> (i32, i32, i32) {
    %c0_i32 = arith.constant 0 : i32
    %c0_i32_0 = arith.constant 0 : i32
    %c0_i32_1 = arith.constant 0 : i32
    return %arg0, %c0_i32, %c0_i32_0 : i32, i32, i32
  }
  func.func @transform_1(%arg0: i32) -> (i32, i32, i32) {
    %c0_i32 = arith.constant 0 : i32
    %c0_i32_0 = arith.constant 0 : i32
    %c0_i32_1 = arith.constant 0 : i32
    return %arg0, %c0_i32, %c0_i32_0 : i32, i32, i32
  }
  func.func @transform_2(%arg0: i32) -> (i32, i32, i32) {
    %c0_i32 = arith.constant 0 : i32
    %c0_i32_0 = arith.constant 0 : i32
    %c0_i32_1 = arith.constant 0 : i32
    return %arg0, %c0_i32, %c0_i32_0 : i32, i32, i32
  }
  func.func @transform_3(%arg0: i32) -> (i32, i32) {
    %c0_i32 = arith.constant 0 : i32
    %c0_i32_0 = arith.constant 0 : i32
    %c0_i32_1 = arith.constant 0 : i32
    return %c0_i32, %c0_i32_0 : i32, i32
  }
  func.func @transform_4(%arg0: i32) -> (i32, i32) {
    %c0_i32 = arith.constant 0 : i32
    %c0_i32_0 = arith.constant 0 : i32
    %c0_i32_1 = arith.constant 0 : i32
    return %c0_i32, %c0_i32_0 : i32, i32
  }
  func.func @transform_5(%arg0: i32) -> (i32, i32) {
    %c0_i32 = arith.constant 0 : i32
    %c0_i32_0 = arith.constant 0 : i32
    %c0_i32_1 = arith.constant 0 : i32
    return %c0_i32, %c0_i32_0 : i32, i32
  }
  func.func @transform_6(%arg0: i32) -> (i32, i32) {
    %c0_i32 = arith.constant 0 : i32
    %c0_i32_0 = arith.constant 0 : i32
    %c0_i32_1 = arith.constant 0 : i32
    return %c0_i32, %c0_i32_0 : i32, i32
  }
  func.func @transform_7(%arg0: i32) -> (i32, i32) {
    %c0_i32 = arith.constant 0 : i32
    %c0_i32_0 = arith.constant 0 : i32
    %c0_i32_1 = arith.constant 0 : i32
    return %c0_i32, %c0_i32_0 : i32, i32
  }
  func.func @transform_8(%arg0: i32) -> (i32, i32) {
    %c0_i32 = arith.constant 0 : i32
    %c0_i32_0 = arith.constant 0 : i32
    %c0_i32_1 = arith.constant 0 : i32
    return %c0_i32, %c0_i32_0 : i32, i32
  }
  func.func @transform_9(%arg0: i32) -> (i32, i32) {
    %c0_i32 = arith.constant 0 : i32
    %c0_i32_0 = arith.constant 0 : i32
    %c0_i32_1 = arith.constant 0 : i32
    return %c0_i32, %c0_i32_0 : i32, i32
  }
  func.func @transform_10(%arg0: i32) -> (i32, i32) {
    %c0_i32 = arith.constant 0 : i32
    %c0_i32_0 = arith.constant 0 : i32
    %c0_i32_1 = arith.constant 0 : i32
    return %c0_i32, %c0_i32_0 : i32, i32
  }
  func.func @transform_11(%arg0: i32) -> (i32, i32, i32) {
    %c0_i32 = arith.constant 0 : i32
    %c0_i32_0 = arith.constant 0 : i32
    %c0_i32_1 = arith.constant 0 : i32
    return %arg0, %c0_i32, %c0_i32_0 : i32, i32, i32
  }
}

</mosaic_0001>

<llo_original>
// kernel: tpu_custom_call.1
$region0: #{tpu_custom_call.1}
  #allocation0 [shape = 'u32[]', space=smem, size = 0x4, offset = 0x4, fixed_abs, tag = 'smem constant byte address 0x4 - core index']
  #allocation1 [shape = 'u32[144,128]{1,0:T(1,128)}', space=vmem, size = 0x12000, scoped, tag = 'internal scratch']
  %s0 = inlined_call_operand.hbm [shape: f32[2,8,32], index: 0, kind: input, shape index: {}]
  %s1 = inlined_call_operand.hbm [shape: f32[2,8,32], index: 1, kind: input, shape index: {}]
  %s2 = inlined_call_operand.hbm [shape: f32[2,8,32], index: 2, kind: input, shape index: {}]
  %s3 = inlined_call_operand.hbm [shape: f32[32,32], index: 3, kind: input, shape index: {}]
  %s4 = inlined_call_operand.vmem [shape: f32[1,32], index: 4, kind: input, shape index: {}]
  %s5 = inlined_call_operand.hbm [shape: f32[32,32], index: 5, kind: input, shape index: {}]
  %s6 = inlined_call_operand.vmem [shape: f32[1,32], index: 6, kind: input, shape index: {}]
  %s7 = inlined_call_operand.hbm [shape: f32[32,32], index: 7, kind: input, shape index: {}]
  %s8 = inlined_call_operand.hbm [shape: f32[1,32], index: 8, kind: input, shape index: {}]
  %s9 = inlined_call_operand.vmem [shape: f32[32,32], index: 9, kind: input, shape index: {}]
  %s10 = inlined_call_operand.vmem [shape: f32[1,32], index: 10, kind: input, shape index: {}]
  %s11 = inlined_call_operand.hbm [shape: f32[2,8,32], index: 11, kind: output, shape index: {}]
  %s12 = sld [smem:[#allocation0]]
  $region105: #{tpu_custom_call.1} parent=0
    _
  %s14 = ssub.s32 1, %s12
  %s15 = scalar_select 0, %s14, %s12
  $region1: #{tpu_custom_call.1} parent=0
    #allocation2 [shape = 'u8[8192]{0}', space=vmem, size = 0x2000, scoped, tag = 'input window, operand 0']
    #allocation3 [shape = 's32[2]{0}', space=sflag, size = 0x8, scoped, tag = 'scoped memory for tpu_custom_call.1']
    #allocation4 [shape = 's32[2]{0}', space=sflag, size = 0x8, scoped, tag = 'scoped memory for tpu_custom_call.1']
    #allocation5 [shape = 'u8[8192]{0}', space=vmem, size = 0x2000, scoped, tag = 'input window, operand 1']
    #allocation6 [shape = 's32[2]{0}', space=sflag, size = 0x8, scoped, tag = 'scoped memory for tpu_custom_call.1']
    #allocation7 [shape = 'u8[8192]{0}', space=vmem, size = 0x2000, scoped, tag = 'input window, operand 2']
    #allocation8 [shape = 'u8[16384]{0}', space=vmem, size = 0x4000, scoped, tag = 'input window, operand 3, single buffered']
    #allocation9 [shape = 's32[1]{0}', space=sflag, size = 0x4, scoped, tag = 'scoped memory for tpu_custom_call.1']
    #allocation10 [shape = 'u8[16384]{0}', space=vmem, size = 0x4000, scoped, tag = 'input window, operand 5, single buffered']
    #allocation11 [shape = 'u8[16384]{0}', space=vmem, size = 0x4000, scoped, tag = 'input window, operand 7, single buffered']
    #allocation12 [shape = 's32[1]{0}', space=sflag, size = 0x4, scoped, tag = 'scoped memory for tpu_custom_call.1']
    #allocation13 [shape = 'u8[512]{0}', space=vmem, size = 0x400, scoped, tag = 'input window, operand 8, single buffered']
    #allocation14 [shape = 'u8[8192]{0}', space=vmem, size = 0x2000, scoped, tag = 'output window, operand 0']
    %16 = vsyncpa [#allocation3], 0
    %s17 = scalar_lea.sflag [#allocation3], 1
    %18 = vsyncpa %s17, 0
    %19 = vsyncpa [#allocation6], 0
    %s20 = scalar_lea.sflag [#allocation6], 1
    %21 = vsyncpa %s20, 0
    %22 = vsyncpa [#allocation9], 0
    %23 = vsyncpa [#allocation12], 0
    %24 = vsyncpa [#allocation4], 0
    %s25 = scalar_lea.sflag [#allocation4], 1
    %26 = vsyncpa %s25, 0
    loop: start=0, step=1, limit=4
    $region2: #{tpu_custom_call.1} parent=1 // loop_pre_header
      _
    $region3: #{tpu_custom_call.1} parent=1 // loop_header
      %s28 = sphi 0, %s32
      %p29 = scmp.ge.s32.totalorder %s28, 4
      %s38 = sphi 0, %s40
      %s41 = sphi 0, %s38
      %s42 = sphi 0, %s41
      %s58 = sphi 0, %s42
      %s64 = sphi 0, %s66
      %s67 = sphi 0, %s64
      %s68 = sphi 0, %s67
      %s84 = sphi 0, %s68
      %s90 = sphi 0, %s92
      %s93 = sphi 0, %s90
      %s94 = sphi 0, %s93
      %s110 = sphi 0, %s94
      %s114 = sphi 0, %s114
      %s116 = sphi 0, %s114
      %s117 = sphi 0, %s116
      %s131 = sphi 0, %s117
      %s135 = sphi 0, %s135
      %s137 = sphi 0, %s135
      %s138 = sphi 0, %s137
      %s152 = sphi 0, %s138
      %s156 = sphi 0, %s156
      %s158 = sphi 0, %s156
      %s159 = sphi 0, %s158
      %s173 = sphi 0, %s159
      %s177 = sphi 0, %s177
      %s179 = sphi 0, %s177
      %s180 = sphi 0, %s179
      %s194 = sphi 0, %s180
      %s198 = sphi 0, %s198
      %s200 = sphi 0, %s198
      %s201 = sphi 0, %s200
      %s215 = sphi 0, %s201
      %s219 = sphi 0, %s219
      %s221 = sphi 0, %s219
      %s222 = sphi 0, %s221
      %s236 = sphi 0, %s222
      %s240 = sphi 0, %s240
      %s242 = sphi 0, %s240
      %s243 = sphi 0, %s242
      %s257 = sphi 0, %s243
      %s261 = sphi 0, %s261
      %s263 = sphi 0, %s261
      %s264 = sphi 0, %s263
      %s278 = sphi 0, %s264
      %s284 = sphi 0, %s286
      %s287 = sphi 0, %s284
      %s288 = sphi 0, %s287
      %s304 = sphi 0, %s288
    $region4: #{tpu_custom_call.1} parent=1 // loop_header_branch
      %31 = sbr.rel (%p29) target = $region8
    $region5: #{tpu_custom_call.1} parent=1 // loop_body
      %s33 = ssub.s32 %s28, 1
      %s34 = ssub.s32 %s28, 2
      %s35 = sadd.s32 %s28, 1
      %s36 = ssub.s32 %s28, %s35
      %p37 = scmp.eq.s32.totalorder %s36, 0
      %s39 = sadd.s32 %s38, 1
      %s40 = scalar_select %p37, %s38, %s39
      %p43 = pneg %p37
      %p44 = scmp.eq.s32.totalorder %s28, 1
      %p45 = por %p43, %p44
      %p46 = scmp.ne.s32.totalorder %s38, %s41
      %p47 = scmp.eq.s32.totalorder %s28, 0
      %p48 = por %p46, %p47
      %p49 = scmp.ne.s32.totalorder %s38, %s41
      %p50 = scmp.eq.s32.totalorder %s33, 1
      %p51 = por %p49, %p50
      %p52 = scmp.ne.s32.totalorder %s41, %s42
      %p53 = scmp.eq.s32.totalorder %s33, 0
      %p54 = por %p52, %p53
      %p55 = scmp.ne.s32.totalorder %s41, %s42
      %p56 = scmp.eq.s32.totalorder %s34, 1
      %p57 = por %p55, %p56
      %p59 = scmp.ne.s32.totalorder %s42, %s58
      %p60 = scmp.eq.s32.totalorder %s34, 0
      %p61 = por %p59, %p60
      %s62 = ssub.s32 %s28, %s35
      %p63 = scmp.eq.s32.totalorder %s62, 0
      %s65 = sadd.s32 %s64, 1
      %s66 = scalar_select %p63, %s64, %s65
      %p69 = pneg %p63
      %p70 = scmp.eq.s32.totalorder %s28, 1
      %p71 = por %p69, %p70
      %p72 = scmp.ne.s32.totalorder %s64, %s67
      %p73 = scmp.eq.s32.totalorder %s28, 0
      %p74 = por %p72, %p73
      %p75 = scmp.ne.s32.totalorder %s64, %s67
      %p76 = scmp.eq.s32.totalorder %s33, 1
      %p77 = por %p75, %p76
      %p78 = scmp.ne.s32.totalorder %s67, %s68
      %p79 = scmp.eq.s32.totalorder %s33, 0
      %p80 = por %p78, %p79
      %p81 = scmp.ne.s32.totalorder %s67, %s68
      %p82 = scmp.eq.s32.totalorder %s34, 1
      %p83 = por %p81, %p82
      %p85 = scmp.ne.s32.totalorder %s68, %s84
      %p86 = scmp.eq.s32.totalorder %s34, 0
      %p87 = por %p85, %p86
      %s88 = ssub.s32 %s28, %s35
      %p89 = scmp.eq.s32.totalorder %s88, 0
      %s91 = sadd.s32 %s90, 1
      %s92 = scalar_select %p89, %s90, %s91
      %p95 = pneg %p89
      %p96 = scmp.eq.s32.totalorder %s28, 1
      %p97 = por %p95, %p96
      %p98 = scmp.ne.s32.totalorder %s90, %s93
      %p99 = scmp.eq.s32.totalorder %s28, 0
      %p100 = por %p98, %p99
      %p101 = scmp.ne.s32.totalorder %s90, %s93
      %p102 = scmp.eq.s32.totalorder %s33, 1
      %p103 = por %p101, %p102
      %p104 = scmp.ne.s32.totalorder %s93, %s94
      %p105 = scmp.eq.s32.totalorder %s33, 0
      %p106 = por %p104, %p105
      %p107 = scmp.ne.s32.totalorder %s93, %s94
      %p108 = scmp.eq.s32.totalorder %s34, 1
      %p109 = por %p107, %p108
      %p111 = scmp.ne.s32.totalorder %s94, %s110
      %p112 = scmp.eq.s32.totalorder %s34, 0
      %p113 = por %p111, %p112
      %s115 = sadd.s32 %s114, 1
      %p118 = scmp.eq.s32.totalorder %s28, 1
      %p119 = scmp.ne.s32.totalorder %s114, %s116
      %p120 = scmp.eq.s32.totalorder %s28, 0
      %p121 = por %p119, %p120
      %p122 = scmp.ne.s32.totalorder %s114, %s116
      %p123 = scmp.eq.s32.totalorder %s33, 1
      %p124 = por %p122, %p123
      %p125 = scmp.ne.s32.totalorder %s116, %s117
      %p126 = scmp.eq.s32.totalorder %s33, 0
      %p127 = por %p125, %p126
      %p128 = scmp.ne.s32.totalorder %s116, %s117
      %p129 = scmp.eq.s32.totalorder %s34, 1
      %p130 = por %p128, %p129
      %p132 = scmp.ne.s32.totalorder %s117, %s131
      %p133 = scmp.eq.s32.totalorder %s34, 0
      %p134 = por %p132, %p133
      %s136 = sadd.s32 %s135, 1
      %p139 = scmp.eq.s32.totalorder %s28, 1
      %p140 = scmp.ne.s32.totalorder %s135, %s137
      %p141 = scmp.eq.s32.totalorder %s28, 0
      %p142 = por %p140, %p141
      %p143 = scmp.ne.s32.totalorder %s135, %s137
      %p144 = scmp.eq.s32.totalorder %s33, 1
      %p145 = por %p143, %p144
      %p146 = scmp.ne.s32.totalorder %s137, %s138
      %p147 = scmp.eq.s32.totalorder %s33, 0
      %p148 = por %p146, %p147
      %p149 = scmp.ne.s32.totalorder %s137, %s138
      %p150 = scmp.eq.s32.totalorder %s34, 1
      %p151 = por %p149, %p150
      %p153 = scmp.ne.s32.totalorder %s138, %s152
      %p154 = scmp.eq.s32.totalorder %s34, 0
      %p155 = por %p153, %p154
      %s157 = sadd.s32 %s156, 1
      %p160 = scmp.eq.s32.totalorder %s28, 1
      %p161 = scmp.ne.s32.totalorder %s156, %s158
      %p162 = scmp.eq.s32.totalorder %s28, 0
      %p163 = por %p161, %p162
      %p164 = scmp.ne.s32.totalorder %s156, %s158
      %p165 = scmp.eq.s32.totalorder %s33, 1
      %p166 = por %p164, %p165
      %p167 = scmp.ne.s32.totalorder %s158, %s159
      %p168 = scmp.eq.s32.totalorder %s33, 0
      %p169 = por %p167, %p168
      %p170 = scmp.ne.s32.totalorder %s158, %s159
      %p171 = scmp.eq.s32.totalorder %s34, 1
      %p172 = por %p170, %p171
      %p174 = scmp.ne.s32.totalorder %s159, %s173
      %p175 = scmp.eq.s32.totalorder %s34, 0
      %p176 = por %p174, %p175
      %s178 = sadd.s32 %s177, 1
      %p181 = scmp.eq.s32.totalorder %s28, 1
      %p182 = scmp.ne.s32.totalorder %s177, %s179
      %p183 = scmp.eq.s32.totalorder %s28, 0
      %p184 = por %p182, %p183
      %p185 = scmp.ne.s32.totalorder %s177, %s179
      %p186 = scmp.eq.s32.totalorder %s33, 1
      %p187 = por %p185, %p186
      %p188 = scmp.ne.s32.totalorder %s179, %s180
      %p189 = scmp.eq.s32.totalorder %s33, 0
      %p190 = por %p188, %p189
      %p191 = scmp.ne.s32.totalorder %s179, %s180
      %p192 = scmp.eq.s32.totalorder %s34, 1
      %p193 = por %p191, %p192
      %p195 = scmp.ne.s32.totalorder %s180, %s194
      %p196 = scmp.eq.s32.totalorder %s34, 0
      %p197 = por %p195, %p196
      %s199 = sadd.s32 %s198, 1
      %p202 = scmp.eq.s32.totalorder %s28, 1
      %p203 = scmp.ne.s32.totalorder %s198, %s200
      %p204 = scmp.eq.s32.totalorder %s28, 0
      %p205 = por %p203, %p204
      %p206 = scmp.ne.s32.totalorder %s198, %s200
      %p207 = scmp.eq.s32.totalorder %s33, 1
      %p208 = por %p206, %p207
      %p209 = scmp.ne.s32.totalorder %s200, %s201
      %p210 = scmp.eq.s32.totalorder %s33, 0
      %p211 = por %p209, %p210
      %p212 = scmp.ne.s32.totalorder %s200, %s201
      %p213 = scmp.eq.s32.totalorder %s34, 1
      %p214 = por %p212, %p213
      %p216 = scmp.ne.s32.totalorder %s201, %s215
      %p217 = scmp.eq.s32.totalorder %s34, 0
      %p218 = por %p216, %p217
      %s220 = sadd.s32 %s219, 1
      %p223 = scmp.eq.s32.totalorder %s28, 1
      %p224 = scmp.ne.s32.totalorder %s219, %s221
      %p225 = scmp.eq.s32.totalorder %s28, 0
      %p226 = por %p224, %p225
      %p227 = scmp.ne.s32.totalorder %s219, %s221
      %p228 = scmp.eq.s32.totalorder %s33, 1
      %p229 = por %p227, %p228
      %p230 = scmp.ne.s32.totalorder %s221, %s222
      %p231 = scmp.eq.s32.totalorder %s33, 0
      %p232 = por %p230, %p231
      %p233 = scmp.ne.s32.totalorder %s221, %s222
      %p234 = scmp.eq.s32.totalorder %s34, 1
      %p235 = por %p233, %p234
      %p237 = scmp.ne.s32.totalorder %s222, %s236
      %p238 = scmp.eq.s32.totalorder %s34, 0
      %p239 = por %p237, %p238
      %s241 = sadd.s32 %s240, 1
      %p244 = scmp.eq.s32.totalorder %s28, 1
      %p245 = scmp.ne.s32.totalorder %s240, %s242
      %p246 = scmp.eq.s32.totalorder %s28, 0
      %p247 = por %p245, %p246
      %p248 = scmp.ne.s32.totalorder %s240, %s242
      %p249 = scmp.eq.s32.totalorder %s33, 1
      %p250 = por %p248, %p249
      %p251 = scmp.ne.s32.totalorder %s242, %s243
      %p252 = scmp.eq.s32.totalorder %s33, 0
      %p253 = por %p251, %p252
      %p254 = scmp.ne.s32.totalorder %s242, %s243
      %p255 = scmp.eq.s32.totalorder %s34, 1
      %p256 = por %p254, %p255
      %p258 = scmp.ne.s32.totalorder %s243, %s257
      %p259 = scmp.eq.s32.totalorder %s34, 0
      %p260 = por %p258, %p259
      %s262 = sadd.s32 %s261, 1
      %p265 = scmp.eq.s32.totalorder %s28, 1
      %p266 = scmp.ne.s32.totalorder %s261, %s263
      %p267 = scmp.eq.s32.totalorder %s28, 0
      %p268 = por %p266, %p267
      %p269 = scmp.ne.s32.totalorder %s261, %s263
      %p270 = scmp.eq.s32.totalorder %s33, 1
      %p271 = por %p269, %p270
      %p272 = scmp.ne.s32.totalorder %s263, %s264
      %p273 = scmp.eq.s32.totalorder %s33, 0
      %p274 = por %p272, %p273
      %p275 = scmp.ne.s32.totalorder %s263, %s264
      %p276 = scmp.eq.s32.totalorder %s34, 1
      %p277 = por %p275, %p276
      %p279 = scmp.ne.s32.totalorder %s264, %s278
      %p280 = scmp.eq.s32.totalorder %s34, 0
      %p281 = por %p279, %p280
      %s282 = ssub.s32 %s28, %s35
      %p283 = scmp.eq.s32.totalorder %s282, 0
      %s285 = sadd.s32 %s284, 1
      %s286 = scalar_select %p283, %s284, %s285
      %p289 = pneg %p283
      %p290 = scmp.eq.s32.totalorder %s28, 1
      %p291 = por %p289, %p290
      %p292 = scmp.ne.s32.totalorder %s284, %s287
      %p293 = scmp.eq.s32.totalorder %s28, 0
      %p294 = por %p292, %p293
      %p295 = scmp.ne.s32.totalorder %s284, %s287
      %p296 = scmp.eq.s32.totalorder %s33, 1
      %p297 = por %p295, %p296
      %p298 = scmp.ne.s32.totalorder %s287, %s288
      %p299 = scmp.eq.s32.totalorder %s33, 0
      %p300 = por %p298, %p299
      %p301 = scmp.ne.s32.totalorder %s287, %s288
      %p302 = scmp.eq.s32.totalorder %s34, 1
      %p303 = por %p301, %p302
      %p305 = scmp.ne.s32.totalorder %s288, %s304
      %p306 = scmp.eq.s32.totalorder %s34, 0
      %p307 = por %p305, %p306
      %p308 = scmp.le.s32.totalorder 1, %s28
      %p309 = scmp.lt.s32.totalorder %s28, 3
      %p310 = pnand %p308, %p309
      %p311 = pneg %p310
      // Predicated region
      $region9: #{tpu_custom_call.1} parent=5 // pred_check
        _
      $region10: #{tpu_custom_call.1} parent=5 // pred_check_branch
        %313 = sbr.rel (%p310) target = $region12
      $region11: #{tpu_custom_call.1} parent=5 // pred_region
        %s314 = ssub.s32 %s28, 1
        // Predicated region
        $region13: #{tpu_custom_call.1} parent=11 // pred_check
          %p315 = pneg %p127
        $region14: #{tpu_custom_call.1} parent=11 // pred_check_branch
          %317 = sbr.rel (%p315) target = $region16
        $region15: #{tpu_custom_call.1} parent=11 // pred_region
          %s319 = ssub.s32 512, 512
          %320 = vsyncadd [#allocation9], %s319
          %s321 = sshll.u32 [#allocation8], 4
          %s322 = int_to_ptr.vmem [resolvable:$true] %s321
          %327 = dma.hbm_to_vmem [thread:$0]  %s3, 512, %s322, [#allocation9], 128, 128, 8
        $region16: #{tpu_custom_call.1} parent=11 // pred_fallthru
          _
        // Predicated region
        $region17: #{tpu_custom_call.1} parent=11 // pred_check
          %p328 = pneg %p148
        $region18: #{tpu_custom_call.1} parent=11 // pred_check_branch
          %330 = sbr.rel (%p328) target = $region20
        $region19: #{tpu_custom_call.1} parent=11 // pred_region
          _
        $region20: #{tpu_custom_call.1} parent=11 // pred_fallthru
          _
        // Predicated region
        $region21: #{tpu_custom_call.1} parent=11 // pred_check
          %p331 = pneg %p169
        $region22: #{tpu_custom_call.1} parent=11 // pred_check_branch
          %333 = sbr.rel (%p331) target = $region24
        $region23: #{tpu_custom_call.1} parent=11 // pred_region
          %s335 = ssub.s32 512, 512
          %336 = vsyncadd [#allocation9], %s335
          %s337 = sshll.u32 [#allocation10], 4
          %s338 = int_to_ptr.vmem [resolvable:$true] %s337
          %343 = dma.hbm_to_vmem [thread:$0]  %s5, 512, %s338, [#allocation9], 128, 128, 8
        $region24: #{tpu_custom_call.1} parent=11 // pred_fallthru
          _
        // Predicated region
        $region25: #{tpu_custom_call.1} parent=11 // pred_check
          %p344 = pneg %p190
        $region26: #{tpu_custom_call.1} parent=11 // pred_check_branch
          %346 = sbr.rel (%p344) target = $region28
        $region27: #{tpu_custom_call.1} parent=11 // pred_region
          _
        $region28: #{tpu_custom_call.1} parent=11 // pred_fallthru
          _
        // Predicated region
        $region29: #{tpu_custom_call.1} parent=11 // pred_check
          %p347 = pneg %p211
        $region30: #{tpu_custom_call.1} parent=11 // pred_check_branch
          %349 = sbr.rel (%p347) target = $region32
        $region31: #{tpu_custom_call.1} parent=11 // pred_region
          %s351 = ssub.s32 512, 512
          %352 = vsyncadd [#allocation12], %s351
          %s353 = sshll.u32 [#allocation11], 4
          %s354 = int_to_ptr.vmem [resolvable:$true] %s353
          %359 = dma.hbm_to_vmem [thread:$0]  %s7, 512, %s354, [#allocation12], 128, 128, 8
        $region32: #{tpu_custom_call.1} parent=11 // pred_fallthru
          _
        // Predicated region
        $region33: #{tpu_custom_call.1} parent=11 // pred_check
          %p360 = pneg %p232
        $region34: #{tpu_custom_call.1} parent=11 // pred_check_branch
          %362 = sbr.rel (%p360) target = $region36
        $region35: #{tpu_custom_call.1} parent=11 // pred_region
          %s364 = ssub.s32 16, 16
          %365 = vsyncadd [#allocation12], %s364
          %s367 = sshll.u32 [#allocation13], 4
          %s368 = int_to_ptr.vmem [resolvable:$true] %s367
          %370 = dma.hbm_to_vmem [thread:$0]  %s8, 16, %s368, [#allocation12]
        $region36: #{tpu_custom_call.1} parent=11 // pred_fallthru
          _
        // Predicated region
        $region37: #{tpu_custom_call.1} parent=11 // pred_check
          %p371 = pneg %p253
        $region38: #{tpu_custom_call.1} parent=11 // pred_check_branch
          %373 = sbr.rel (%p371) target = $region40
        $region39: #{tpu_custom_call.1} parent=11 // pred_region
          _
        $region40: #{tpu_custom_call.1} parent=11 // pred_fallthru
          _
        // Predicated region
        $region41: #{tpu_custom_call.1} parent=11 // pred_check
          %p374 = pneg %p274
        $region42: #{tpu_custom_call.1} parent=11 // pred_check_branch
          %376 = sbr.rel (%p374) target = $region44
        $region43: #{tpu_custom_call.1} parent=11 // pred_region
          _
        $region44: #{tpu_custom_call.1} parent=11 // pred_fallthru
          _
      $region12: #{tpu_custom_call.1} parent=5 // pred_fallthru
        _
      %p377 = scmp.lt.s32.totalorder %s28, 2
      // Predicated region
      $region45: #{tpu_custom_call.1} parent=5 // pred_check
        %p378 = pneg %p377
      $region46: #{tpu_custom_call.1} parent=5 // pred_check_branch
        %380 = sbr.rel (%p378) target = $region48
      $region47: #{tpu_custom_call.1} parent=5 // pred_region
        // Predicated region
        $region49: #{tpu_custom_call.1} parent=47 // pred_check
          %p381 = pneg %p48
        $region50: #{tpu_custom_call.1} parent=47 // pred_check_branch
          %383 = sbr.rel (%p381) target = $region52
        $region51: #{tpu_custom_call.1} parent=47 // pred_region
          %s384 = sand.u32 %s38, 1
          %s385 = scalar_lea.sflag [#allocation3], %s384
          %s386 = sand.u32 %s38, 1
          %s387 = smul.addr %s386, 8
          %s388 = scalar_lea.vmem [#allocation2], %s387
          %s390 = ssub.s32 128, 128
          %391 = vsyncadd %s385, %s390
          %s392 = smul.addr %s28, 128
          %s393 = scalar_lea.hbm %s0, %s392
          %s395 = sshll.u32 %s388, 4
          %s396 = int_to_ptr.vmem [resolvable:$true] %s395
          %398 = dma.hbm_to_vmem [thread:$0]  %s393, 128, %s396, %s385
        $region52: #{tpu_custom_call.1} parent=47 // pred_fallthru
          _
        // Predicated region
        $region53: #{tpu_custom_call.1} parent=47 // pred_check
          %p399 = pneg %p74
        $region54: #{tpu_custom_call.1} parent=47 // pred_check_branch
          %401 = sbr.rel (%p399) target = $region56
        $region55: #{tpu_custom_call.1} parent=47 // pred_region
          %s402 = sand.u32 %s28, 1
          %s403 = scalar_lea.sflag [#allocation6], %s402
          %s404 = sand.u32 %s64, 1
          %s405 = smul.addr %s404, 8
          %s406 = scalar_lea.vmem [#allocation5], %s405
          %s408 = ssub.s32 128, 128
          %409 = vsyncadd %s403, %s408
          %s410 = smul.addr %s28, 128
          %s411 = scalar_lea.hbm %s1, %s410
          %s413 = sshll.u32 %s406, 4
          %s414 = int_to_ptr.vmem [resolvable:$true] %s413
          %416 = dma.hbm_to_vmem [thread:$0]  %s411, 128, %s414, %s403
        $region56: #{tpu_custom_call.1} parent=47 // pred_fallthru
          _
        // Predicated region
        $region57: #{tpu_custom_call.1} parent=47 // pred_check
          %p417 = pneg %p100
        $region58: #{tpu_custom_call.1} parent=47 // pred_check_branch
          %419 = sbr.rel (%p417) target = $region60
        $region59: #{tpu_custom_call.1} parent=47 // pred_region
          %s420 = sand.u32 %s28, 1
          %s421 = scalar_lea.sflag [#allocation6], %s420
          %s422 = sand.u32 %s90, 1
          %s423 = smul.addr %s422, 8
          %s424 = scalar_lea.vmem [#allocation7], %s423
          %s426 = ssub.s32 128, 128
          %427 = vsyncadd %s421, %s426
          %s428 = smul.addr %s28, 128
          %s429 = scalar_lea.hbm %s2, %s428
          %s431 = sshll.u32 %s424, 4
          %s432 = int_to_ptr.vmem [resolvable:$true] %s431
          %434 = dma.hbm_to_vmem [thread:$0]  %s429, 128, %s432, %s421
        $region60: #{tpu_custom_call.1} parent=47 // pred_fallthru
          _
      $region48: #{tpu_custom_call.1} parent=5 // pred_fallthru
        _
      %p435 = scmp.le.s32.totalorder 1, %s28
      %p436 = scmp.lt.s32.totalorder %s28, 3
      %p437 = pnand %p435, %p436
      %p438 = pneg %p437
      // Predicated region
      $region61: #{tpu_custom_call.1} parent=5 // pred_check
        _
      $region62: #{tpu_custom_call.1} parent=5 // pred_check_branch
        %440 = sbr.rel (%p437) target = $region64
      $region63: #{tpu_custom_call.1} parent=5 // pred_region
        %s441 = ssub.s32 %s28, 1
        %s442 = sand.u32 %s41, 1
        %s443 = scalar_lea.sflag [#allocation3], %s442
        %s444 = sand.u32 %s41, 1
        %s445 = smul.addr %s444, 8
        %s446 = scalar_lea.vmem [#allocation2], %s445
        // Predicated region
        $region65: #{tpu_custom_call.1} parent=63 // pred_check
          %p447 = pneg %p54
        $region66: #{tpu_custom_call.1} parent=63 // pred_check_branch
          %449 = sbr.rel (%p447) target = $region68
        $region67: #{tpu_custom_call.1} parent=63 // pred_region
          %450 = dma.done %s443, 128
        $region68: #{tpu_custom_call.1} parent=63 // pred_fallthru
          _
        %s451 = sand.u32 %s33, 1
        %s452 = scalar_lea.sflag [#allocation6], %s451
        %s453 = sand.u32 %s67, 1
        %s454 = smul.addr %s453, 8
        %s455 = scalar_lea.vmem [#allocation5], %s454
        // Predicated region
        $region69: #{tpu_custom_call.1} parent=63 // pred_check
          %p456 = pneg %p80
        $region70: #{tpu_custom_call.1} parent=63 // pred_check_branch
          %458 = sbr.rel (%p456) target = $region72
        $region71: #{tpu_custom_call.1} parent=63 // pred_region
          %459 = dma.done %s452, 128
        $region72: #{tpu_custom_call.1} parent=63 // pred_fallthru
          _
        %s460 = sand.u32 %s33, 1
        %s461 = scalar_lea.sflag [#allocation6], %s460
        %s462 = sand.u32 %s93, 1
        %s463 = smul.addr %s462, 8
        %s464 = scalar_lea.vmem [#allocation7], %s463
        // Predicated region
        $region73: #{tpu_custom_call.1} parent=63 // pred_check
          %p465 = pneg %p106
        $region74: #{tpu_custom_call.1} parent=63 // pred_check_branch
          %467 = sbr.rel (%p465) target = $region76
        $region75: #{tpu_custom_call.1} parent=63 // pred_region
          %468 = dma.done %s461, 128
        $region76: #{tpu_custom_call.1} parent=63 // pred_fallthru
          _
        // Predicated region
        $region77: #{tpu_custom_call.1} parent=63 // pred_check
          %p469 = pneg %p127
        $region78: #{tpu_custom_call.1} parent=63 // pred_check_branch
          %471 = sbr.rel (%p469) target = $region80
        $region79: #{tpu_custom_call.1} parent=63 // pred_region
          %472 = dma.done [#allocation9], 512
        $region80: #{tpu_custom_call.1} parent=63 // pred_fallthru
          _
        // Predicated region
        $region81: #{tpu_custom_call.1} parent=63 // pred_check
          %p473 = pneg %p169
        $region82: #{tpu_custom_call.1} parent=63 // pred_check_branch
          %475 = sbr.rel (%p473) target = $region84
        $region83: #{tpu_custom_call.1} parent=63 // pred_region
          %476 = dma.done [#allocation9], 512
        $region84: #{tpu_custom_call.1} parent=63 // pred_fallthru
          _
        // Predicated region
        $region85: #{tpu_custom_call.1} parent=63 // pred_check
          %p477 = pneg %p211
        $region86: #{tpu_custom_call.1} parent=63 // pred_check_branch
          %479 = sbr.rel (%p477) target = $region88
        $region87: #{tpu_custom_call.1} parent=63 // pred_region
          %480 = dma.done [#allocation12], 512
        $region88: #{tpu_custom_call.1} parent=63 // pred_fallthru
          _
        // Predicated region
        $region89: #{tpu_custom_call.1} parent=63 // pred_check
          %p481 = pneg %p232
        $region90: #{tpu_custom_call.1} parent=63 // pred_check_branch
          %483 = sbr.rel (%p481) target = $region92
        $region91: #{tpu_custom_call.1} parent=63 // pred_region
          %484 = dma.done [#allocation12], 16
        $region92: #{tpu_custom_call.1} parent=63 // pred_fallthru
          _
        %s485 = sand.u32 %s41, 1
        %s486 = scalar_lea.sflag [#allocation3], %s485
        %s487 = sand.u32 %s41, 1
        %s488 = smul.addr %s487, 8
        %s489 = scalar_lea.vmem [#allocation2], %s488
        %p490 = pneg %p54
        %p491 = pneg %p51
        %s492 = sand.u32 %s33, 1
        %s493 = scalar_lea.sflag [#allocation6], %s492
        %s494 = sand.u32 %s67, 1
        %s495 = smul.addr %s494, 8
        %s496 = scalar_lea.vmem [#allocation5], %s495
        %p497 = pneg %p80
        %p498 = pneg %p77
        %s499 = sand.u32 %s33, 1
        %s500 = scalar_lea.sflag [#allocation6], %s499
        %s501 = sand.u32 %s93, 1
        %s502 = smul.addr %s501, 8
        %s503 = scalar_lea.vmem [#allocation7], %s502
        %p504 = pneg %p106
        %p505 = pneg %p103
        %p506 = pneg %p127
        %p507 = pneg %p124
        %p508 = pneg %p148
        %p509 = pneg %p145
        %p510 = pneg %p169
        %p511 = pneg %p166
        %p512 = pneg %p190
        %p513 = pneg %p187
        %p514 = pneg %p211
        %p515 = pneg %p208
        %p516 = pneg %p232
        %p517 = pneg %p229
        %p518 = pneg %p253
        %p519 = pneg %p250
        %p520 = pneg %p274
        %p521 = pneg %p271
        %p522 = pneg %p300
        %p523 = pneg %p297
        %s524 = sand.u32 %s287, 1
        %s525 = scalar_lea.sflag [#allocation4], %s524
        %s526 = sand.u32 %s287, 1
        %s527 = smul.addr %s526, 8
        %s528 = scalar_lea.vmem [#allocation14], %s527
        %v529 = vld [vmem:[%s446] sm:$0xff]
        %v530 = vld [vmem:[%s455] sm:$0xff]
        %v531 = vld [vmem:[%s464] sm:$0xff]
        %v532 = vld [vmem:[#allocation8] sm:$0xff]
        %v533 = vld [vmem:[#allocation8 + $0x8] sm:$0xff]
        %v534 = vld [vmem:[#allocation8 + $0x10] sm:$0xff]
        %v535 = vld [vmem:[#allocation8 + $0x18] sm:$0xff]
        %v536 = vld [vmem:[%s4] sm:$0x1]
        %v538 = vlaneseq
        %v539 = vshrl.u32 %v538, 7
        %v540 = vsub.s32 0, %v539
        %v541 = vrot.slane %v536, %v540
        %vm543 = vcmask 261120
        %v545 = vsel %vm543, %v529, 0
        %547 = vmatprep.subr.mxu0 0.0
        %548 = vmatpush1.msra.mxu0 %v532
        %549 = vmatprep.subr.mxu0 0.0
        %550 = vmatpush1.msra.mxu0 %v533
        %551 = vmatprep.subr.mxu0 0.0
        %552 = vmatpush1.msra.mxu0 %v534
        %553 = vmatprep.subr.mxu0 0.0
        %554 = vmatpush1.msra.mxu0 %v535
        %555 = vmatprep.subr.mxu0 0.0
        %556 = vmatpush1.msra.mxu0 0.0
        %557 = vmatprep.subr.mxu0 0.0
        %558 = vmatpush1.msra.mxu0 0.0
        %559 = vmatprep.subr.mxu0 0.0
        %560 = vmatpush1.msra.mxu0 0.0
        %561 = vmatprep.subr.mxu0 0.0
        %562 = vmatpush1.msra.mxu0 0.0
        %563 = vmatprep.subr.mxu0 0.0
        %564 = vmatpush1.msra.mxu0 0.0
        %565 = vmatprep.subr.mxu0 0.0
        %566 = vmatpush1.msra.mxu0 0.0
        %567 = vmatprep.subr.mxu0 0.0
        %568 = vmatpush1.msra.mxu0 0.0
        %569 = vmatprep.subr.mxu0 0.0
        %570 = vmatpush1.msra.mxu0 0.0
        %571 = vmatprep.subr.mxu0 0.0
        %572 = vmatpush1.msra.mxu0 0.0
        %573 = vmatprep.subr.mxu0 0.0
        %574 = vmatpush1.msra.mxu0 0.0
        %575 = vmatprep.subr.mxu0 0.0
        %576 = vmatpush1.msra.mxu0 0.0
        %577 = vmatprep.subr.mxu0 0.0
        %578 = vmatpush1.msra.mxu0 0.0
        %579 = vmatprep.subr.mxu0 0.0
        %580 = vmatpush1.msra.mxu0 0.0
        %581 = vmatprep.subr.mxu0 0.0
        %582 = vmatpush1.msra.mxu0 0.0
        %583 = vmatprep.subr.mxu0 0.0
        %584 = vmatpush1.msra.mxu0 0.0
        %585 = vmatprep.subr.mxu0 0.0
        %586 = vmatpush1.msra.mxu0 0.0
        %587 = vmatprep.subr.mxu0 0.0
        %588 = vmatpush1.msra.mxu0 0.0
        %589 = vmatprep.subr.mxu0 0.0
        %590 = vmatpush1.msra.mxu0 0.0
        %591 = vmatprep.subr.mxu0 0.0
        %592 = vmatpush1.msra.mxu0 0.0
        %593 = vmatprep.subr.mxu0 0.0
        %594 = vmatpush1.msra.mxu0 0.0
        %595 = vmatprep.subr.mxu0 0.0
        %596 = vmatpush1.msra.mxu0 0.0
        %597 = vmatprep.subr.mxu0 0.0
        %598 = vmatpush1.msra.mxu0 0.0
        %599 = vmatprep.subr.mxu0 0.0
        %600 = vmatpush1.msra.mxu0 0.0
        %601 = vmatprep.subr.mxu0 0.0
        %602 = vmatpush1.msra.mxu0 0.0
        %603 = vmatprep.subr.mxu0 0.0
        %604 = vmatpush1.msra.mxu0 0.0
        %605 = vmatprep.subr.mxu0 0.0
        %606 = vmatpush1.msra.mxu0 0.0
        %607 = vmatprep.subr.mxu0 0.0
        %608 = vmatpush1.msra.mxu0 0.0
        %609 = vmatprep.subr.mxu0 0.0
        %610 = vmatpush1.msra.mxu0 0.0
        %611 = vmatprep.mubr.f32.mxu0 0.0
        %612 = vmatmul.mubr.f32.gmra.mrb[0].mxu0 %v545
        %v613 = vpop.f32.mrb[0].mxu0
        %v614 = vadd.f32 %v541, %v613
        %v615 = vpop.f32.mrb[0].mxu0
        %616 = vdwg.mxu0
        %v617 = vld [vmem:[#allocation10] sm:$0xff]
        %v618 = vld [vmem:[#allocation10 + $0x8] sm:$0xff]
        %v619 = vld [vmem:[#allocation10 + $0x10] sm:$0xff]
        %v620 = vld [vmem:[#allocation10 + $0x18] sm:$0xff]
        %v621 = vld [vmem:[%s6] sm:$0x1]
        %v623 = vlaneseq
        %v624 = vshrl.u32 %v623, 7
        %v625 = vsub.s32 0, %v624
        %v626 = vrot.slane %v621, %v625
        %v629 = vsel %vm543, %v530, 0
        %631 = vmatprep.subr.mxu0 0.0
        %632 = vmatpush1.msra.mxu0 %v617
        %633 = vmatprep.subr.mxu0 0.0
        %634 = vmatpush1.msra.mxu0 %v618
        %635 = vmatprep.subr.mxu0 0.0
        %636 = vmatpush1.msra.mxu0 %v619
        %637 = vmatprep.subr.mxu0 0.0
        %638 = vmatpush1.msra.mxu0 %v620
        %639 = vmatprep.subr.mxu0 0.0
        %640 = vmatpush1.msra.mxu0 0.0
        %641 = vmatprep.subr.mxu0 0.0
        %642 = vmatpush1.msra.mxu0 0.0
        %643 = vmatprep.subr.mxu0 0.0
        %644 = vmatpush1.msra.mxu0 0.0
        %645 = vmatprep.subr.mxu0 0.0
        %646 = vmatpush1.msra.mxu0 0.0
        %647 = vmatprep.subr.mxu0 0.0
        %648 = vmatpush1.msra.mxu0 0.0
        %649 = vmatprep.subr.mxu0 0.0
        %650 = vmatpush1.msra.mxu0 0.0
        %651 = vmatprep.subr.mxu0 0.0
        %652 = vmatpush1.msra.mxu0 0.0
        %653 = vmatprep.subr.mxu0 0.0
        %654 = vmatpush1.msra.mxu0 0.0
        %655 = vmatprep.subr.mxu0 0.0
        %656 = vmatpush1.msra.mxu0 0.0
        %657 = vmatprep.subr.mxu0 0.0
        %658 = vmatpush1.msra.mxu0 0.0
        %659 = vmatprep.subr.mxu0 0.0
        %660 = vmatpush1.msra.mxu0 0.0
        %661 = vmatprep.subr.mxu0 0.0
        %662 = vmatpush1.msra.mxu0 0.0
        %663 = vmatprep.subr.mxu0 0.0
        %664 = vmatpush1.msra.mxu0 0.0
        %665 = vmatprep.subr.mxu0 0.0
        %666 = vmatpush1.msra.mxu0 0.0
        %667 = vmatprep.subr.mxu0 0.0
        %668 = vmatpush1.msra.mxu0 0.0
        %669 = vmatprep.subr.mxu0 0.0
        %670 = vmatpush1.msra.mxu0 0.0
        %671 = vmatprep.subr.mxu0 0.0
        %672 = vmatpush1.msra.mxu0 0.0
        %673 = vmatprep.subr.mxu0 0.0
        %674 = vmatpush1.msra.mxu0 0.0
        %675 = vmatprep.subr.mxu0 0.0
        %676 = vmatpush1.msra.mxu0 0.0
        %677 = vmatprep.subr.mxu0 0.0
        %678 = vmatpush1.msra.mxu0 0.0
        %679 = vmatprep.subr.mxu0 0.0
        %680 = vmatpush1.msra.mxu0 0.0
        %681 = vmatprep.subr.mxu0 0.0
        %682 = vmatpush1.msra.mxu0 0.0
        %683 = vmatprep.subr.mxu0 0.0
        %684 = vmatpush1.msra.mxu0 0.0
        %685 = vmatprep.subr.mxu0 0.0
        %686 = vmatpush1.msra.mxu0 0.0
        %687 = vmatprep.subr.mxu0 0.0
        %688 = vmatpush1.msra.mxu0 0.0
        %689 = vmatprep.subr.mxu0 0.0
        %690 = vmatpush1.msra.mxu0 0.0
        %691 = vmatprep.subr.mxu0 0.0
        %692 = vmatpush1.msra.mxu0 0.0
        %693 = vmatprep.subr.mxu0 0.0
        %694 = vmatpush1.msra.mxu0 0.0
        %695 = vmatprep.mubr.f32.mxu0 0.0
        %696 = vmatmul.mubr.f32.gmra.mrb[0].mxu0 %v629
        %v697 = vpop.f32.mrb[0].mxu0
        %v698 = vadd.f32 %v626, %v697
        %v699 = vpop.f32.mrb[0].mxu0
        %700 = vdwg.mxu0
        %v701 = vld [vmem:[#allocation11] sm:$0xff]
        %v702 = vld [vmem:[#allocation11 + $0x8] sm:$0xff]
        %v703 = vld [vmem:[#allocation11 + $0x10] sm:$0xff]
        %v704 = vld [vmem:[#allocation11 + $0x18] sm:$0xff]
        %v705 = vld [vmem:[#allocation13] sm:$0x1]
        %v707 = vlaneseq
        %v708 = vshrl.u32 %v707, 7
        %v709 = vsub.s32 0, %v708
        %v710 = vrot.slane %v705, %v709
        %v713 = vsel %vm543, %v531, 0
        %715 = vmatprep.subr.mxu0 0.0
        %716 = vmatpush1.msra.mxu0 %v701
        %717 = vmatprep.subr.mxu0 0.0
        %718 = vmatpush1.msra.mxu0 %v702
        %719 = vmatprep.subr.mxu0 0.0
        %720 = vmatpush1.msra.mxu0 %v703
        %721 = vmatprep.subr.mxu0 0.0
        %722 = vmatpush1.msra.mxu0 %v704
        %723 = vmatprep.subr.mxu0 0.0
        %724 = vmatpush1.msra.mxu0 0.0
        %725 = vmatprep.subr.mxu0 0.0
        %726 = vmatpush1.msra.mxu0 0.0
        %727 = vmatprep.subr.mxu0 0.0
        %728 = vmatpush1.msra.mxu0 0.0
        %729 = vmatprep.subr.mxu0 0.0
        %730 = vmatpush1.msra.mxu0 0.0
        %731 = vmatprep.subr.mxu0 0.0
        %732 = vmatpush1.msra.mxu0 0.0
        %733 = vmatprep.subr.mxu0 0.0
        %734 = vmatpush1.msra.mxu0 0.0
        %735 = vmatprep.subr.mxu0 0.0
        %736 = vmatpush1.msra.mxu0 0.0
        %737 = vmatprep.subr.mxu0 0.0
        %738 = vmatpush1.msra.mxu0 0.0
        %739 = vmatprep.subr.mxu0 0.0
        %740 = vmatpush1.msra.mxu0 0.0
        %741 = vmatprep.subr.mxu0 0.0
        %742 = vmatpush1.msra.mxu0 0.0
        %743 = vmatprep.subr.mxu0 0.0
        %744 = vmatpush1.msra.mxu0 0.0
        %745 = vmatprep.subr.mxu0 0.0
        %746 = vmatpush1.msra.mxu0 0.0
        %747 = vmatprep.subr.mxu0 0.0
        %748 = vmatpush1.msra.mxu0 0.0
        %749 = vmatprep.subr.mxu0 0.0
        %750 = vmatpush1.msra.mxu0 0.0
        %751 = vmatprep.subr.mxu0 0.0
        %752 = vmatpush1.msra.mxu0 0.0
        %753 = vmatprep.subr.mxu0 0.0
        %754 = vmatpush1.msra.mxu0 0.0
        %755 = vmatprep.subr.mxu0 0.0
        %756 = vmatpush1.msra.mxu0 0.0
        %757 = vmatprep.subr.mxu0 0.0
        %758 = vmatpush1.msra.mxu0 0.0
        %759 = vmatprep.subr.mxu0 0.0
        %760 = vmatpush1.msra.mxu0 0.0
        %761 = vmatprep.subr.mxu0 0.0
        %762 = vmatpush1.msra.mxu0 0.0
        %763 = vmatprep.subr.mxu0 0.0
        %764 = vmatpush1.msra.mxu0 0.0
        %765 = vmatprep.subr.mxu0 0.0
        %766 = vmatpush1.msra.mxu0 0.0
        %767 = vmatprep.subr.mxu0 0.0
        %768 = vmatpush1.msra.mxu0 0.0
        %769 = vmatprep.subr.mxu0 0.0
        %770 = vmatpush1.msra.mxu0 0.0
        %771 = vmatprep.subr.mxu0 0.0
        %772 = vmatpush1.msra.mxu0 0.0
        %773 = vmatprep.subr.mxu0 0.0
        %774 = vmatpush1.msra.mxu0 0.0
        %775 = vmatprep.subr.mxu0 0.0
        %776 = vmatpush1.msra.mxu0 0.0
        %777 = vmatprep.subr.mxu0 0.0
        %778 = vmatpush1.msra.mxu0 0.0
        %779 = vmatprep.mubr.f32.mxu0 0.0
        %780 = vmatmul.mubr.f32.gmra.mrb[0].mxu0 %v713
        %v781 = vpop.f32.mrb[0].mxu0
        %v782 = vadd.f32 %v710, %v781
        %v783 = vpop.f32.mrb[0].mxu0
        %784 = vdwg.mxu0
        %vm785 = vcmask 64512
        %v787 = vsel %vm785, %v614, 0
        %v790 = vsel %vm785, %v698, 0
        %792 = vmatprep.subr.mxu0 0.0
        %793 = vmatpush1.xpose.msra.mxu0 %v790
        %794 = vmatprep.subr.mxu0 0.0
        %795 = vmatpush1.xpose.msra.mxu0 0.0
        %796 = vmatprep.subr.mxu0 0.0
        %797 = vmatpush1.xpose.msra.mxu0 0.0
        %798 = vmatprep.subr.mxu0 0.0
        %799 = vmatpush1.xpose.msra.mxu0 0.0
        %800 = vmatprep.subr.mxu0 0.0
        %801 = vmatpush1.xpose.msra.mxu0 0.0
        %802 = vmatprep.subr.mxu0 0.0
        %803 = vmatpush1.xpose.msra.mxu0 0.0
        %804 = vmatprep.subr.mxu0 0.0
        %805 = vmatpush1.xpose.msra.mxu0 0.0
        %806 = vmatprep.subr.mxu0 0.0
        %807 = vmatpush1.xpose.msra.mxu0 0.0
        %808 = vmatprep.subr.mxu0 0.0
        %809 = vmatpush1.xpose.msra.mxu0 0.0
        %810 = vmatprep.subr.mxu0 0.0
        %811 = vmatpush1.xpose.msra.mxu0 0.0
        %812 = vmatprep.subr.mxu0 0.0
        %813 = vmatpush1.xpose.msra.mxu0 0.0
        %814 = vmatprep.subr.mxu0 0.0
        %815 = vmatpush1.xpose.msra.mxu0 0.0
        %816 = vmatprep.subr.mxu0 0.0
        %817 = vmatpush1.xpose.msra.mxu0 0.0
        %818 = vmatprep.subr.mxu0 0.0
        %819 = vmatpush1.xpose.msra.mxu0 0.0
        %820 = vmatprep.subr.mxu0 0.0
        %821 = vmatpush1.xpose.msra.mxu0 0.0
        %822 = vmatprep.subr.mxu0 0.0
        %823 = vmatpush1.xpose.msra.mxu0 0.0
        %824 = vmatprep.subr.mxu0 0.0
        %825 = vmatpush1.xpose.msra.mxu0 0.0
        %826 = vmatprep.subr.mxu0 0.0
        %827 = vmatpush1.xpose.msra.mxu0 0.0
        %828 = vmatprep.subr.mxu0 0.0
        %829 = vmatpush1.xpose.msra.mxu0 0.0
        %830 = vmatprep.subr.mxu0 0.0
        %831 = vmatpush1.xpose.msra.mxu0 0.0
        %832 = vmatprep.subr.mxu0 0.0
        %833 = vmatpush1.xpose.msra.mxu0 0.0
        %834 = vmatprep.subr.mxu0 0.0
        %835 = vmatpush1.xpose.msra.mxu0 0.0
        %836 = vmatprep.subr.mxu0 0.0
        %837 = vmatpush1.xpose.msra.mxu0 0.0
        %838 = vmatprep.subr.mxu0 0.0
        %839 = vmatpush1.xpose.msra.mxu0 0.0
        %840 = vmatprep.subr.mxu0 0.0
        %841 = vmatpush1.xpose.msra.mxu0 0.0
        %842 = vmatprep.subr.mxu0 0.0
        %843 = vmatpush1.xpose.msra.mxu0 0.0
        %844 = vmatprep.subr.mxu0 0.0
        %845 = vmatpush1.xpose.msra.mxu0 0.0
        %846 = vmatprep.subr.mxu0 0.0
        %847 = vmatpush1.xpose.msra.mxu0 0.0
        %848 = vmatprep.subr.mxu0 0.0
        %849 = vmatpush1.xpose.msra.mxu0 0.0
        %850 = vmatprep.subr.mxu0 0.0
        %851 = vmatpush1.xpose.msra.mxu0 0.0
        %852 = vmatprep.subr.mxu0 0.0
        %853 = vmatpush1.xpose.msra.mxu0 0.0
        %854 = vmatprep.subr.mxu0 0.0
        %855 = vmatpush1.xpose.msra.mxu0 0.0
        %856 = vmatprep.mubr.f32.mxu0 0.0
        %857 = vmatmul.mubr.f32.gmra.mrb[0].mxu0 %v787
        %v858 = vpop.f32.mrb[0].mxu0
        %v859 = vadd.f32 0.0, %v858
        %v860 = vpop.f32.mrb[0].mxu0
        %861 = vdwg.mxu0
        %v862 = vmul.f32 %v859, 0.35355338
        %v863 = vsel %vm785, %v862, -inf
        %864 = vmax.xlane.f32.xlu0 %v863
        %v865 = vpop.xlane.xlu0 %864
        %v866 = vsub.f32 %v862, %v865
        %v867 = vmul.f32 %v866, 1.442695
        %v868 = vpow.pop %v867
        %v869 = vsel %vm785, %v868, 0.0
        %870 = vadd.xlane.f32.xlu0 %v869
        %v871 = vpop.xlane.xlu0 %870
        %v872 = vrcp.pop %v871
        %v873 = vmul.f32 %v868, %v872
        %v875 = vsel %vm785, %v873, 0
        %877 = vmatprep.subr.mxu0 0.0
        %878 = vmatpush1.msra.mxu0 %v782
        %879 = vmatprep.subr.mxu0 0.0
        %880 = vmatpush1.msra.mxu0 0.0
        %881 = vmatprep.subr.mxu0 0.0
        %882 = vmatpush1.msra.mxu0 0.0
        %883 = vmatprep.subr.mxu0 0.0
        %884 = vmatpush1.msra.mxu0 0.0
        %885 = vmatprep.subr.mxu0 0.0
        %886 = vmatpush1.msra.mxu0 0.0
        %887 = vmatprep.subr.mxu0 0.0
        %888 = vmatpush1.msra.mxu0 0.0
        %889 = vmatprep.subr.mxu0 0.0
        %890 = vmatpush1.msra.mxu0 0.0
        %891 = vmatprep.subr.mxu0 0.0
        %892 = vmatpush1.msra.mxu0 0.0
        %893 = vmatprep.subr.mxu0 0.0
        %894 = vmatpush1.msra.mxu0 0.0
        %895 = vmatprep.subr.mxu0 0.0
        %896 = vmatpush1.msra.mxu0 0.0
        %897 = vmatprep.subr.mxu0 0.0
        %898 = vmatpush1.msra.mxu0 0.0
        %899 = vmatprep.subr.mxu0 0.0
        %900 = vmatpush1.msra.mxu0 0.0
        %901 = vmatprep.subr.mxu0 0.0
        %902 = vmatpush1.msra.mxu0 0.0
        %903 = vmatprep.subr.mxu0 0.0
        %904 = vmatpush1.msra.mxu0 0.0
        %905 = vmatprep.subr.mxu0 0.0
        %906 = vmatpush1.msra.mxu0 0.0
        %907 = vmatprep.subr.mxu0 0.0
        %908 = vmatpush1.msra.mxu0 0.0
        %909 = vmatprep.subr.mxu0 0.0
        %910 = vmatpush1.msra.mxu0 0.0
        %911 = vmatprep.subr.mxu0 0.0
        %912 = vmatpush1.msra.mxu0 0.0
        %913 = vmatprep.subr.mxu0 0.0
        %914 = vmatpush1.msra.mxu0 0.0
        %915 = vmatprep.subr.mxu0 0.0
        %916 = vmatpush1.msra.mxu0 0.0
        %917 = vmatprep.subr.mxu0 0.0
        %918 = vmatpush1.msra.mxu0 0.0
        %919 = vmatprep.subr.mxu0 0.0
        %920 = vmatpush1.msra.mxu0 0.0
        %921 = vmatprep.subr.mxu0 0.0
        %922 = vmatpush1.msra.mxu0 0.0
        %923 = vmatprep.subr.mxu0 0.0
        %924 = vmatpush1.msra.mxu0 0.0
        %925 = vmatprep.subr.mxu0 0.0
        %926 = vmatpush1.msra.mxu0 0.0
        %927 = vmatprep.subr.mxu0 0.0
        %928 = vmatpush1.msra.mxu0 0.0
        %929 = vmatprep.subr.mxu0 0.0
        %930 = vmatpush1.msra.mxu0 0.0
        %931 = vmatprep.subr.mxu0 0.0
        %932 = vmatpush1.msra.mxu0 0.0
        %933 = vmatprep.subr.mxu0 0.0
        %934 = vmatpush1.msra.mxu0 0.0
        %935 = vmatprep.subr.mxu0 0.0
        %936 = vmatpush1.msra.mxu0 0.0
        %937 = vmatprep.subr.mxu0 0.0
        %938 = vmatpush1.msra.mxu0 0.0
        %939 = vmatprep.subr.mxu0 0.0
        %940 = vmatpush1.msra.mxu0 0.0
        %941 = vmatprep.mubr.f32.mxu0 0.0
        %942 = vmatmul.mubr.f32.gmra.mrb[0].mxu0 %v875
        %v943 = vpop.f32.mrb[0].mxu0
        %v944 = vadd.f32 0.0, %v943
        %v945 = vpop.f32.mrb[0].mxu0
        %946 = vdwg.mxu0
        %v947 = vld [vmem:[%s9] sm:$0xff]
        %948 = vrot.lane.b32.xlu0 %v614, 120
        %v949 = vpop.permute.xlu0 %948
        %950 = vrot.lane.b32.xlu0 %v698, 120
        %v951 = vpop.permute.xlu0 %950
        %v952 = vsel %vm785, %v949, 0
        %v954 = vsel %vm785, %v951, 0
        %956 = vmatprep.subr.mxu0 0.0
        %957 = vmatpush1.xpose.msra.mxu0 %v954
        %958 = vmatprep.subr.mxu0 0.0
        %959 = vmatpush1.xpose.msra.mxu0 0.0
        %960 = vmatprep.subr.mxu0 0.0
        %961 = vmatpush1.xpose.msra.mxu0 0.0
        %962 = vmatprep.subr.mxu0 0.0
        %963 = vmatpush1.xpose.msra.mxu0 0.0
        %964 = vmatprep.subr.mxu0 0.0
        %965 = vmatpush1.xpose.msra.mxu0 0.0
        %966 = vmatprep.subr.mxu0 0.0
        %967 = vmatpush1.xpose.msra.mxu0 0.0
        %968 = vmatprep.subr.mxu0 0.0
        %969 = vmatpush1.xpose.msra.mxu0 0.0
        %970 = vmatprep.subr.mxu0 0.0
        %971 = vmatpush1.xpose.msra.mxu0 0.0
        %972 = vmatprep.subr.mxu0 0.0
        %973 = vmatpush1.xpose.msra.mxu0 0.0
        %974 = vmatprep.subr.mxu0 0.0
        %975 = vmatpush1.xpose.msra.mxu0 0.0
        %976 = vmatprep.subr.mxu0 0.0
        %977 = vmatpush1.xpose.msra.mxu0 0.0
        %978 = vmatprep.subr.mxu0 0.0
        %979 = vmatpush1.xpose.msra.mxu0 0.0
        %980 = vmatprep.subr.mxu0 0.0
        %981 = vmatpush1.xpose.msra.mxu0 0.0
        %982 = vmatprep.subr.mxu0 0.0
        %983 = vmatpush1.xpose.msra.mxu0 0.0
        %984 = vmatprep.subr.mxu0 0.0
        %985 = vmatpush1.xpose.msra.mxu0 0.0
        %986 = vmatprep.subr.mxu0 0.0
        %987 = vmatpush1.xpose.msra.mxu0 0.0
        %988 = vmatprep.subr.mxu0 0.0
        %989 = vmatpush1.xpose.msra.mxu0 0.0
        %990 = vmatprep.subr.mxu0 0.0
        %991 = vmatpush1.xpose.msra.mxu0 0.0
        %992 = vmatprep.subr.mxu0 0.0
        %993 = vmatpush1.xpose.msra.mxu0 0.0
        %994 = vmatprep.subr.mxu0 0.0
        %995 = vmatpush1.xpose.msra.mxu0 0.0
        %996 = vmatprep.subr.mxu0 0.0
        %997 = vmatpush1.xpose.msra.mxu0 0.0
        %998 = vmatprep.subr.mxu0 0.0
        %999 = vmatpush1.xpose.msra.mxu0 0.0
        %1000 = vmatprep.subr.mxu0 0.0
        %1001 = vmatpush1.xpose.msra.mxu0 0.0
        %1002 = vmatprep.subr.mxu0 0.0
        %1003 = vmatpush1.xpose.msra.mxu0 0.0
        %1004 = vmatprep.subr.mxu0 0.0
        %1005 = vmatpush1.xpose.msra.mxu0 0.0
        %1006 = vmatprep.subr.mxu0 0.0
        %1007 = vmatpush1.xpose.msra.mxu0 0.0
        %1008 = vmatprep.subr.mxu0 0.0
        %1009 = vmatpush1.xpose.msra.mxu0 0.0
        %1010 = vmatprep.subr.mxu0 0.0
        %1011 = vmatpush1.xpose.msra.mxu0 0.0
        %1012 = vmatprep.subr.mxu0 0.0
        %1013 = vmatpush1.xpose.msra.mxu0 0.0
        %1014 = vmatprep.subr.mxu0 0.0
        %1015 = vmatpush1.xpose.msra.mxu0 0.0
        %1016 = vmatprep.subr.mxu0 0.0
        %1017 = vmatpush1.xpose.msra.mxu0 0.0
        %1018 = vmatprep.subr.mxu0 0.0
        %1019 = vmatpush1.xpose.msra.mxu0 0.0
        %1020 = vmatprep.mubr.f32.mxu0 0.0
        %1021 = vmatmul.mubr.f32.gmra.mrb[0].mxu0 %v952
        %v1022 = vpop.f32.mrb[0].mxu0
        %v1023 = vadd.f32 0.0, %v1022
        %v1024 = vpop.f32.mrb[0].mxu0
        %1025 = vdwg.mxu0
        %v1026 = vmul.f32 %v1023, 0.35355338
        %v1027 = vsel %vm785, %v1026, -inf
        %1028 = vmax.xlane.f32.xlu0 %v1027
        %v1029 = vpop.xlane.xlu0 %1028
        %v1030 = vsub.f32 %v1026, %v1029
        %v1031 = vmul.f32 %v1030, 1.442695
        %v1032 = vpow.pop %v1031
        %v1033 = vsel %vm785, %v1032, 0.0
        %1034 = vadd.xlane.f32.xlu0 %v1033
        %v1035 = vpop.xlane.xlu0 %1034
        %v1036 = vrcp.pop %v1035
        %v1037 = vmul.f32 %v1032, %v1036
        %1039 = vrot.lane.b32.xlu0 %v782, 120
        %v1040 = vpop.permute.xlu0 %1039
        %v1043 = vsel %vm785, %v1037, 0
        %1045 = vmatprep.subr.mxu0 0.0
        %1046 = vmatpush1.msra.mxu0 %v1040
        %1047 = vmatprep.subr.mxu0 0.0
        %1048 = vmatpush1.msra.mxu0 0.0
        %1049 = vmatprep.subr.mxu0 0.0
        %1050 = vmatpush1.msra.mxu0 0.0
        %1051 = vmatprep.subr.mxu0 0.0
        %1052 = vmatpush1.msra.mxu0 0.0
        %1053 = vmatprep.subr.mxu0 0.0
        %1054 = vmatpush1.msra.mxu0 0.0
        %1055 = vmatprep.subr.mxu0 0.0
        %1056 = vmatpush1.msra.mxu0 0.0
        %1057 = vmatprep.subr.mxu0 0.0
        %1058 = vmatpush1.msra.mxu0 0.0
        %1059 = vmatprep.subr.mxu0 0.0
        %1060 = vmatpush1.msra.mxu0 0.0
        %1061 = vmatprep.subr.mxu0 0.0
        %1062 = vmatpush1.msra.mxu0 0.0
        %1063 = vmatprep.subr.mxu0 0.0
        %1064 = vmatpush1.msra.mxu0 0.0
        %1065 = vmatprep.subr.mxu0 0.0
        %1066 = vmatpush1.msra.mxu0 0.0
        %1067 = vmatprep.subr.mxu0 0.0
        %1068 = vmatpush1.msra.mxu0 0.0
        %1069 = vmatprep.subr.mxu0 0.0
        %1070 = vmatpush1.msra.mxu0 0.0
        %1071 = vmatprep.subr.mxu0 0.0
        %1072 = vmatpush1.msra.mxu0 0.0
        %1073 = vmatprep.subr.mxu0 0.0
        %1074 = vmatpush1.msra.mxu0 0.0
        %1075 = vmatprep.subr.mxu0 0.0
        %1076 = vmatpush1.msra.mxu0 0.0
        %1077 = vmatprep.subr.mxu0 0.0
        %1078 = vmatpush1.msra.mxu0 0.0
        %1079 = vmatprep.subr.mxu0 0.0
        %1080 = vmatpush1.msra.mxu0 0.0
        %1081 = vmatprep.subr.mxu0 0.0
        %1082 = vmatpush1.msra.mxu0 0.0
        %1083 = vmatprep.subr.mxu0 0.0
        %1084 = vmatpush1.msra.mxu0 0.0
        %1085 = vmatprep.subr.mxu0 0.0
        %1086 = vmatpush1.msra.mxu0 0.0
        %1087 = vmatprep.subr.mxu0 0.0
        %1088 = vmatpush1.msra.mxu0 0.0
        %1089 = vmatprep.subr.mxu0 0.0
        %1090 = vmatpush1.msra.mxu0 0.0
        %1091 = vmatprep.subr.mxu0 0.0
        %1092 = vmatpush1.msra.mxu0 0.0
        %1093 = vmatprep.subr.mxu0 0.0
        %1094 = vmatpush1.msra.mxu0 0.0
        %1095 = vmatprep.subr.mxu0 0.0
        %1096 = vmatpush1.msra.mxu0 0.0
        %1097 = vmatprep.subr.mxu0 0.0
        %1098 = vmatpush1.msra.mxu0 0.0
        %1099 = vmatprep.subr.mxu0 0.0
        %1100 = vmatpush1.msra.mxu0 0.0
        %1101 = vmatprep.subr.mxu0 0.0
        %1102 = vmatpush1.msra.mxu0 0.0
        %1103 = vmatprep.subr.mxu0 0.0
        %1104 = vmatpush1.msra.mxu0 0.0
        %1105 = vmatprep.subr.mxu0 0.0
        %1106 = vmatpush1.msra.mxu0 0.0
        %1107 = vmatprep.subr.mxu0 0.0
        %1108 = vmatpush1.msra.mxu0 0.0
        %1109 = vmatprep.mubr.f32.mxu0 0.0
        %1110 = vmatmul.mubr.f32.gmra.mrb[0].mxu0 %v1043
        %v1111 = vpop.f32.mrb[0].mxu0
        %v1112 = vadd.f32 0.0, %v1111
        %v1113 = vpop.f32.mrb[0].mxu0
        %1114 = vdwg.mxu0
        %v1115 = vld [vmem:[%s9 + $0x8] sm:$0xff]
        %v1117 = vsel %vm785, %v1112, 0
        %1119 = vmatprep.subr.mxu0 0.0
        %1120 = vmatpush1.msra.mxu0 %v1115
        %1121 = vmatprep.subr.mxu0 0.0
        %1122 = vmatpush1.msra.mxu0 0.0
        %1123 = vmatprep.subr.mxu0 0.0
        %1124 = vmatpush1.msra.mxu0 0.0
        %1125 = vmatprep.subr.mxu0 0.0
        %1126 = vmatpush1.msra.mxu0 0.0
        %1127 = vmatprep.subr.mxu0 0.0
        %1128 = vmatpush1.msra.mxu0 0.0
        %1129 = vmatprep.subr.mxu0 0.0
        %1130 = vmatpush1.msra.mxu0 0.0
        %1131 = vmatprep.subr.mxu0 0.0
        %1132 = vmatpush1.msra.mxu0 0.0
        %1133 = vmatprep.subr.mxu0 0.0
        %1134 = vmatpush1.msra.mxu0 0.0
        %1135 = vmatprep.subr.mxu0 0.0
        %1136 = vmatpush1.msra.mxu0 0.0
        %1137 = vmatprep.subr.mxu0 0.0
        %1138 = vmatpush1.msra.mxu0 0.0
        %1139 = vmatprep.subr.mxu0 0.0
        %1140 = vmatpush1.msra.mxu0 0.0
        %1141 = vmatprep.subr.mxu0 0.0
        %1142 = vmatpush1.msra.mxu0 0.0
        %1143 = vmatprep.subr.mxu0 0.0
        %1144 = vmatpush1.msra.mxu0 0.0
        %1145 = vmatprep.subr.mxu0 0.0
        %1146 = vmatpush1.msra.mxu0 0.0
        %1147 = vmatprep.subr.mxu0 0.0
        %1148 = vmatpush1.msra.mxu0 0.0
        %1149 = vmatprep.subr.mxu0 0.0
        %1150 = vmatpush1.msra.mxu0 0.0
        %1151 = vmatprep.subr.mxu0 0.0
        %1152 = vmatpush1.msra.mxu0 0.0
        %1153 = vmatprep.subr.mxu0 0.0
        %1154 = vmatpush1.msra.mxu0 0.0
        %1155 = vmatprep.subr.mxu0 0.0
        %1156 = vmatpush1.msra.mxu0 0.0
        %1157 = vmatprep.subr.mxu0 0.0
        %1158 = vmatpush1.msra.mxu0 0.0
        %1159 = vmatprep.subr.mxu0 0.0
        %1160 = vmatpush1.msra.mxu0 0.0
        %1161 = vmatprep.subr.mxu0 0.0
        %1162 = vmatpush1.msra.mxu0 0.0
        %1163 = vmatprep.subr.mxu0 0.0
        %1164 = vmatpush1.msra.mxu0 0.0
        %1165 = vmatprep.subr.mxu0 0.0
        %1166 = vmatpush1.msra.mxu0 0.0
        %1167 = vmatprep.subr.mxu0 0.0
        %1168 = vmatpush1.msra.mxu0 0.0
        %1169 = vmatprep.subr.mxu0 0.0
        %1170 = vmatpush1.msra.mxu0 0.0
        %1171 = vmatprep.subr.mxu0 0.0
        %1172 = vmatpush1.msra.mxu0 0.0
        %1173 = vmatprep.subr.mxu0 0.0
        %1174 = vmatpush1.msra.mxu0 0.0
        %1175 = vmatprep.subr.mxu0 0.0
        %1176 = vmatpush1.msra.mxu0 0.0
        %1177 = vmatprep.subr.mxu0 0.0
        %1178 = vmatpush1.msra.mxu0 0.0
        %1179 = vmatprep.subr.mxu0 0.0
        %1180 = vmatpush1.msra.mxu0 0.0
        %1181 = vmatprep.subr.mxu0 0.0
        %1182 = vmatpush1.msra.mxu0 0.0
        %1183 = vmatprep.mubr.f32.mxu0 0.0
        %1184 = vmatmul.mubr.f32.gmra.mrb[0].mxu0 %v1117
        %v1185 = vpop.f32.mrb[0].mxu0
        %v1186 = vadd.f32 0.0, %v1185
        %v1187 = vpop.f32.mrb[0].mxu0
        %1188 = vdwg.mxu0
        %v1190 = vsel %vm785, %v944, 0
        %1192 = vmatprep.subr.mxu0 0.0
        %1193 = vmatpush1.msra.mxu0 %v947
        %1194 = vmatprep.subr.mxu0 0.0
        %1195 = vmatpush1.msra.mxu0 0.0
        %1196 = vmatprep.subr.mxu0 0.0
        %1197 = vmatpush1.msra.mxu0 0.0
        %1198 = vmatprep.subr.mxu0 0.0
        %1199 = vmatpush1.msra.mxu0 0.0
        %1200 = vmatprep.subr.mxu0 0.0
        %1201 = vmatpush1.msra.mxu0 0.0
        %1202 = vmatprep.subr.mxu0 0.0
        %1203 = vmatpush1.msra.mxu0 0.0
        %1204 = vmatprep.subr.mxu0 0.0
        %1205 = vmatpush1.msra.mxu0 0.0
        %1206 = vmatprep.subr.mxu0 0.0
        %1207 = vmatpush1.msra.mxu0 0.0
        %1208 = vmatprep.subr.mxu0 0.0
        %1209 = vmatpush1.msra.mxu0 0.0
        %1210 = vmatprep.subr.mxu0 0.0
        %1211 = vmatpush1.msra.mxu0 0.0
        %1212 = vmatprep.subr.mxu0 0.0
        %1213 = vmatpush1.msra.mxu0 0.0
        %1214 = vmatprep.subr.mxu0 0.0
        %1215 = vmatpush1.msra.mxu0 0.0
        %1216 = vmatprep.subr.mxu0 0.0
        %1217 = vmatpush1.msra.mxu0 0.0
        %1218 = vmatprep.subr.mxu0 0.0
        %1219 = vmatpush1.msra.mxu0 0.0
        %1220 = vmatprep.subr.mxu0 0.0
        %1221 = vmatpush1.msra.mxu0 0.0
        %1222 = vmatprep.subr.mxu0 0.0
        %1223 = vmatpush1.msra.mxu0 0.0
        %1224 = vmatprep.subr.mxu0 0.0
        %1225 = vmatpush1.msra.mxu0 0.0
        %1226 = vmatprep.subr.mxu0 0.0
        %1227 = vmatpush1.msra.mxu0 0.0
        %1228 = vmatprep.subr.mxu0 0.0
        %1229 = vmatpush1.msra.mxu0 0.0
        %1230 = vmatprep.subr.mxu0 0.0
        %1231 = vmatpush1.msra.mxu0 0.0
        %1232 = vmatprep.subr.mxu0 0.0
        %1233 = vmatpush1.msra.mxu0 0.0
        %1234 = vmatprep.subr.mxu0 0.0
        %1235 = vmatpush1.msra.mxu0 0.0
        %1236 = vmatprep.subr.mxu0 0.0
        %1237 = vmatpush1.msra.mxu0 0.0
        %1238 = vmatprep.subr.mxu0 0.0
        %1239 = vmatpush1.msra.mxu0 0.0
        %1240 = vmatprep.subr.mxu0 0.0
        %1241 = vmatpush1.msra.mxu0 0.0
        %1242 = vmatprep.subr.mxu0 0.0
        %1243 = vmatpush1.msra.mxu0 0.0
        %1244 = vmatprep.subr.mxu0 0.0
        %1245 = vmatpush1.msra.mxu0 0.0
        %1246 = vmatprep.subr.mxu0 0.0
        %1247 = vmatpush1.msra.mxu0 0.0
        %1248 = vmatprep.subr.mxu0 0.0
        %1249 = vmatpush1.msra.mxu0 0.0
        %1250 = vmatprep.subr.mxu0 0.0
        %1251 = vmatpush1.msra.mxu0 0.0
        %1252 = vmatprep.subr.mxu0 0.0
        %1253 = vmatpush1.msra.mxu0 0.0
        %1254 = vmatprep.subr.mxu0 0.0
        %1255 = vmatpush1.msra.mxu0 0.0
        %1256 = vmatprep.mubr.f32.mxu0 0.0
        %1257 = vmatmul.mubr.f32.gmra.mrb[0].mxu0 %v1190
        %v1258 = vpop.f32.mrb[0].mxu0
        %v1259 = vadd.f32 %v1186, %v1258
        %v1260 = vpop.f32.mrb[0].mxu0
        %1261 = vdwg.mxu0
        %1262 = vrot.lane.b32.xlu0 %v614, 112
        %v1263 = vpop.permute.xlu0 %1262
        %1264 = vrot.lane.b32.xlu0 %v698, 112
        %v1265 = vpop.permute.xlu0 %1264
        %v1266 = vsel %vm785, %v1263, 0
        %v1268 = vsel %vm785, %v1265, 0
        %1270 = vmatprep.subr.mxu0 0.0
        %1271 = vmatpush1.xpose.msra.mxu0 %v1268
        %1272 = vmatprep.subr.mxu0 0.0
        %1273 = vmatpush1.xpose.msra.mxu0 0.0
        %1274 = vmatprep.subr.mxu0 0.0
        %1275 = vmatpush1.xpose.msra.mxu0 0.0
        %1276 = vmatprep.subr.mxu0 0.0
        %1277 = vmatpush1.xpose.msra.mxu0 0.0
        %1278 = vmatprep.subr.mxu0 0.0
        %1279 = vmatpush1.xpose.msra.mxu0 0.0
        %1280 = vmatprep.subr.mxu0 0.0
        %1281 = vmatpush1.xpose.msra.mxu0 0.0
        %1282 = vmatprep.subr.mxu0 0.0
        %1283 = vmatpush1.xpose.msra.mxu0 0.0
        %1284 = vmatprep.subr.mxu0 0.0
        %1285 = vmatpush1.xpose.msra.mxu0 0.0
        %1286 = vmatprep.subr.mxu0 0.0
        %1287 = vmatpush1.xpose.msra.mxu0 0.0
        %1288 = vmatprep.subr.mxu0 0.0
        %1289 = vmatpush1.xpose.msra.mxu0 0.0
        %1290 = vmatprep.subr.mxu0 0.0
        %1291 = vmatpush1.xpose.msra.mxu0 0.0
        %1292 = vmatprep.subr.mxu0 0.0
        %1293 = vmatpush1.xpose.msra.mxu0 0.0
        %1294 = vmatprep.subr.mxu0 0.0
        %1295 = vmatpush1.xpose.msra.mxu0 0.0
        %1296 = vmatprep.subr.mxu0 0.0
        %1297 = vmatpush1.xpose.msra.mxu0 0.0
        %1298 = vmatprep.subr.mxu0 0.0
        %1299 = vmatpush1.xpose.msra.mxu0 0.0
        %1300 = vmatprep.subr.mxu0 0.0
        %1301 = vmatpush1.xpose.msra.mxu0 0.0
        %1302 = vmatprep.subr.mxu0 0.0
        %1303 = vmatpush1.xpose.msra.mxu0 0.0
        %1304 = vmatprep.subr.mxu0 0.0
        %1305 = vmatpush1.xpose.msra.mxu0 0.0
        %1306 = vmatprep.subr.mxu0 0.0
        %1307 = vmatpush1.xpose.msra.mxu0 0.0
        %1308 = vmatprep.subr.mxu0 0.0
        %1309 = vmatpush1.xpose.msra.mxu0 0.0
        %1310 = vmatprep.subr.mxu0 0.0
        %1311 = vmatpush1.xpose.msra.mxu0 0.0
        %1312 = vmatprep.subr.mxu0 0.0
        %1313 = vmatpush1.xpose.msra.mxu0 0.0
        %1314 = vmatprep.subr.mxu0 0.0
        %1315 = vmatpush1.xpose.msra.mxu0 0.0
        %1316 = vmatprep.subr.mxu0 0.0
        %1317 = vmatpush1.xpose.msra.mxu0 0.0
        %1318 = vmatprep.subr.mxu0 0.0
        %1319 = vmatpush1.xpose.msra.mxu0 0.0
        %1320 = vmatprep.subr.mxu0 0.0
        %1321 = vmatpush1.xpose.msra.mxu0 0.0
        %1322 = vmatprep.subr.mxu0 0.0
        %1323 = vmatpush1.xpose.msra.mxu0 0.0
        %1324 = vmatprep.subr.mxu0 0.0
        %1325 = vmatpush1.xpose.msra.mxu0 0.0
        %1326 = vmatprep.subr.mxu0 0.0
        %1327 = vmatpush1.xpose.msra.mxu0 0.0
        %1328 = vmatprep.subr.mxu0 0.0
        %1329 = vmatpush1.xpose.msra.mxu0 0.0
        %1330 = vmatprep.subr.mxu0 0.0
        %1331 = vmatpush1.xpose.msra.mxu0 0.0
        %1332 = vmatprep.subr.mxu0 0.0
        %1333 = vmatpush1.xpose.msra.mxu0 0.0
        %1334 = vmatprep.mubr.f32.mxu0 0.0
        %1335 = vmatmul.mubr.f32.gmra.mrb[0].mxu0 %v1266
        %v1336 = vpop.f32.mrb[0].mxu0
        %v1337 = vadd.f32 0.0, %v1336
        %v1338 = vpop.f32.mrb[0].mxu0
        %1339 = vdwg.mxu0
        %v1340 = vmul.f32 %v1337, 0.35355338
        %v1341 = vsel %vm785, %v1340, -inf
        %1342 = vmax.xlane.f32.xlu0 %v1341
        %v1343 = vpop.xlane.xlu0 %1342
        %v1344 = vsub.f32 %v1340, %v1343
        %v1345 = vmul.f32 %v1344, 1.442695
        %v1346 = vpow.pop %v1345
        %v1347 = vsel %vm785, %v1346, 0.0
        %1348 = vadd.xlane.f32.xlu0 %v1347
        %v1349 = vpop.xlane.xlu0 %1348
        %v1350 = vrcp.pop %v1349
        %v1351 = vmul.f32 %v1346, %v1350
        %1352 = vrot.lane.b32.xlu0 %v782, 112
        %v1353 = vpop.permute.xlu0 %1352
        %v1356 = vsel %vm785, %v1351, 0
        %1358 = vmatprep.subr.mxu0 0.0
        %1359 = vmatpush1.msra.mxu0 %v1353
        %1360 = vmatprep.subr.mxu0 0.0
        %1361 = vmatpush1.msra.mxu0 0.0
        %1362 = vmatprep.subr.mxu0 0.0
        %1363 = vmatpush1.msra.mxu0 0.0
        %1364 = vmatprep.subr.mxu0 0.0
        %1365 = vmatpush1.msra.mxu0 0.0
        %1366 = vmatprep.subr.mxu0 0.0
        %1367 = vmatpush1.msra.mxu0 0.0
        %1368 = vmatprep.subr.mxu0 0.0
        %1369 = vmatpush1.msra.mxu0 0.0
        %1370 = vmatprep.subr.mxu0 0.0
        %1371 = vmatpush1.msra.mxu0 0.0
        %1372 = vmatprep.subr.mxu0 0.0
        %1373 = vmatpush1.msra.mxu0 0.0
        %1374 = vmatprep.subr.mxu0 0.0
        %1375 = vmatpush1.msra.mxu0 0.0
        %1376 = vmatprep.subr.mxu0 0.0
        %1377 = vmatpush1.msra.mxu0 0.0
        %1378 = vmatprep.subr.mxu0 0.0
        %1379 = vmatpush1.msra.mxu0 0.0
        %1380 = vmatprep.subr.mxu0 0.0
        %1381 = vmatpush1.msra.mxu0 0.0
        %1382 = vmatprep.subr.mxu0 0.0
        %1383 = vmatpush1.msra.mxu0 0.0
        %1384 = vmatprep.subr.mxu0 0.0
        %1385 = vmatpush1.msra.mxu0 0.0
        %1386 = vmatprep.subr.mxu0 0.0
        %1387 = vmatpush1.msra.mxu0 0.0
        %1388 = vmatprep.subr.mxu0 0.0
        %1389 = vmatpush1.msra.mxu0 0.0
        %1390 = vmatprep.subr.mxu0 0.0
        %1391 = vmatpush1.msra.mxu0 0.0
        %1392 = vmatprep.subr.mxu0 0.0
        %1393 = vmatpush1.msra.mxu0 0.0
        %1394 = vmatprep.subr.mxu0 0.0
        %1395 = vmatpush1.msra.mxu0 0.0
        %1396 = vmatprep.subr.mxu0 0.0
        %1397 = vmatpush1.msra.mxu0 0.0
        %1398 = vmatprep.subr.mxu0 0.0
        %1399 = vmatpush1.msra.mxu0 0.0
        %1400 = vmatprep.subr.mxu0 0.0
        %1401 = vmatpush1.msra.mxu0 0.0
        %1402 = vmatprep.subr.mxu0 0.0
        %1403 = vmatpush1.msra.mxu0 0.0
        %1404 = vmatprep.subr.mxu0 0.0
        %1405 = vmatpush1.msra.mxu0 0.0
        %1406 = vmatprep.subr.mxu0 0.0
        %1407 = vmatpush1.msra.mxu0 0.0
        %1408 = vmatprep.subr.mxu0 0.0
        %1409 = vmatpush1.msra.mxu0 0.0
        %1410 = vmatprep.subr.mxu0 0.0
        %1411 = vmatpush1.msra.mxu0 0.0
        %1412 = vmatprep.subr.mxu0 0.0
        %1413 = vmatpush1.msra.mxu0 0.0
        %1414 = vmatprep.subr.mxu0 0.0
        %1415 = vmatpush1.msra.mxu0 0.0
        %1416 = vmatprep.subr.mxu0 0.0
        %1417 = vmatpush1.msra.mxu0 0.0
        %1418 = vmatprep.subr.mxu0 0.0
        %1419 = vmatpush1.msra.mxu0 0.0
        %1420 = vmatprep.subr.mxu0 0.0
        %1421 = vmatpush1.msra.mxu0 0.0
        %1422 = vmatprep.mubr.f32.mxu0 0.0
        %1423 = vmatmul.mubr.f32.gmra.mrb[0].mxu0 %v1356
        %v1424 = vpop.f32.mrb[0].mxu0
        %v1425 = vadd.f32 0.0, %v1424
        %v1426 = vpop.f32.mrb[0].mxu0
        %1427 = vdwg.mxu0
        %v1428 = vld [vmem:[%s9 + $0x10] sm:$0xff]
        %v1430 = vsel %vm785, %v1425, 0
        %1432 = vmatprep.subr.mxu0 0.0
        %1433 = vmatpush1.msra.mxu0 %v1428
        %1434 = vmatprep.subr.mxu0 0.0
        %1435 = vmatpush1.msra.mxu0 0.0
        %1436 = vmatprep.subr.mxu0 0.0
        %1437 = vmatpush1.msra.mxu0 0.0
        %1438 = vmatprep.subr.mxu0 0.0
        %1439 = vmatpush1.msra.mxu0 0.0
        %1440 = vmatprep.subr.mxu0 0.0
        %1441 = vmatpush1.msra.mxu0 0.0
        %1442 = vmatprep.subr.mxu0 0.0
        %1443 = vmatpush1.msra.mxu0 0.0
        %1444 = vmatprep.subr.mxu0 0.0
        %1445 = vmatpush1.msra.mxu0 0.0
        %1446 = vmatprep.subr.mxu0 0.0
        %1447 = vmatpush1.msra.mxu0 0.0
        %1448 = vmatprep.subr.mxu0 0.0
        %1449 = vmatpush1.msra.mxu0 0.0
        %1450 = vmatprep.subr.mxu0 0.0
        %1451 = vmatpush1.msra.mxu0 0.0
        %1452 = vmatprep.subr.mxu0 0.0
        %1453 = vmatpush1.msra.mxu0 0.0
        %1454 = vmatprep.subr.mxu0 0.0
        %1455 = vmatpush1.msra.mxu0 0.0
        %1456 = vmatprep.subr.mxu0 0.0
        %1457 = vmatpush1.msra.mxu0 0.0
        %1458 = vmatprep.subr.mxu0 0.0
        %1459 = vmatpush1.msra.mxu0 0.0
        %1460 = vmatprep.subr.mxu0 0.0
        %1461 = vmatpush1.msra.mxu0 0.0
        %1462 = vmatprep.subr.mxu0 0.0
        %1463 = vmatpush1.msra.mxu0 0.0
        %1464 = vmatprep.subr.mxu0 0.0
        %1465 = vmatpush1.msra.mxu0 0.0
        %1466 = vmatprep.subr.mxu0 0.0
        %1467 = vmatpush1.msra.mxu0 0.0
        %1468 = vmatprep.subr.mxu0 0.0
        %1469 = vmatpush1.msra.mxu0 0.0
        %1470 = vmatprep.subr.mxu0 0.0
        %1471 = vmatpush1.msra.mxu0 0.0
        %1472 = vmatprep.subr.mxu0 0.0
        %1473 = vmatpush1.msra.mxu0 0.0
        %1474 = vmatprep.subr.mxu0 0.0
        %1475 = vmatpush1.msra.mxu0 0.0
        %1476 = vmatprep.subr.mxu0 0.0
        %1477 = vmatpush1.msra.mxu0 0.0
        %1478 = vmatprep.subr.mxu0 0.0
        %1479 = vmatpush1.msra.mxu0 0.0
        %1480 = vmatprep.subr.mxu0 0.0
        %1481 = vmatpush1.msra.mxu0 0.0
        %1482 = vmatprep.subr.mxu0 0.0
        %1483 = vmatpush1.msra.mxu0 0.0
        %1484 = vmatprep.subr.mxu0 0.0
        %1485 = vmatpush1.msra.mxu0 0.0
        %1486 = vmatprep.subr.mxu0 0.0
        %1487 = vmatpush1.msra.mxu0 0.0
        %1488 = vmatprep.subr.mxu0 0.0
        %1489 = vmatpush1.msra.mxu0 0.0
        %1490 = vmatprep.subr.mxu0 0.0
        %1491 = vmatpush1.msra.mxu0 0.0
        %1492 = vmatprep.subr.mxu0 0.0
        %1493 = vmatpush1.msra.mxu0 0.0
        %1494 = vmatprep.subr.mxu0 0.0
        %1495 = vmatpush1.msra.mxu0 0.0
        %1496 = vmatprep.mubr.f32.mxu0 0.0
        %1497 = vmatmul.mubr.f32.gmra.mrb[0].mxu0 %v1430
        %v1498 = vpop.f32.mrb[0].mxu0
        %v1499 = vadd.f32 0.0, %v1498
        %v1500 = vpop.f32.mrb[0].mxu0
        %1501 = vdwg.mxu0
        %v1502 = vadd.f32 %v1259, %v1499
        %1503 = vrot.lane.b32.xlu0 %v614, 104
        %v1504 = vpop.permute.xlu0 %1503
        %1505 = vrot.lane.b32.xlu0 %v698, 104
        %v1506 = vpop.permute.xlu0 %1505
        %v1507 = vsel %vm785, %v1504, 0
        %v1509 = vsel %vm785, %v1506, 0
        %1511 = vmatprep.subr.mxu0 0.0
        %1512 = vmatpush1.xpose.msra.mxu0 %v1509
        %1513 = vmatprep.subr.mxu0 0.0
        %1514 = vmatpush1.xpose.msra.mxu0 0.0
        %1515 = vmatprep.subr.mxu0 0.0
        %1516 = vmatpush1.xpose.msra.mxu0 0.0
        %1517 = vmatprep.subr.mxu0 0.0
        %1518 = vmatpush1.xpose.msra.mxu0 0.0
        %1519 = vmatprep.subr.mxu0 0.0
        %1520 = vmatpush1.xpose.msra.mxu0 0.0
        %1521 = vmatprep.subr.mxu0 0.0
        %1522 = vmatpush1.xpose.msra.mxu0 0.0
        %1523 = vmatprep.subr.mxu0 0.0
        %1524 = vmatpush1.xpose.msra.mxu0 0.0
        %1525 = vmatprep.subr.mxu0 0.0
        %1526 = vmatpush1.xpose.msra.mxu0 0.0
        %1527 = vmatprep.subr.mxu0 0.0
        %1528 = vmatpush1.xpose.msra.mxu0 0.0
        %1529 = vmatprep.subr.mxu0 0.0
        %1530 = vmatpush1.xpose.msra.mxu0 0.0
        %1531 = vmatprep.subr.mxu0 0.0
        %1532 = vmatpush1.xpose.msra.mxu0 0.0
        %1533 = vmatprep.subr.mxu0 0.0
        %1534 = vmatpush1.xpose.msra.mxu0 0.0
        %1535 = vmatprep.subr.mxu0 0.0
        %1536 = vmatpush1.xpose.msra.mxu0 0.0
        %1537 = vmatprep.subr.mxu0 0.0
        %1538 = vmatpush1.xpose.msra.mxu0 0.0
        %1539 = vmatprep.subr.mxu0 0.0
        %1540 = vmatpush1.xpose.msra.mxu0 0.0
        %1541 = vmatprep.subr.mxu0 0.0
        %1542 = vmatpush1.xpose.msra.mxu0 0.0
        %1543 = vmatprep.subr.mxu0 0.0
        %1544 = vmatpush1.xpose.msra.mxu0 0.0
        %1545 = vmatprep.subr.mxu0 0.0
        %1546 = vmatpush1.xpose.msra.mxu0 0.0
        %1547 = vmatprep.subr.mxu0 0.0
        %1548 = vmatpush1.xpose.msra.mxu0 0.0
        %1549 = vmatprep.subr.mxu0 0.0
        %1550 = vmatpush1.xpose.msra.mxu0 0.0
        %1551 = vmatprep.subr.mxu0 0.0
        %1552 = vmatpush1.xpose.msra.mxu0 0.0
        %1553 = vmatprep.subr.mxu0 0.0
        %1554 = vmatpush1.xpose.msra.mxu0 0.0
        %1555 = vmatprep.subr.mxu0 0.0
        %1556 = vmatpush1.xpose.msra.mxu0 0.0
        %1557 = vmatprep.subr.mxu0 0.0
        %1558 = vmatpush1.xpose.msra.mxu0 0.0
        %1559 = vmatprep.subr.mxu0 0.0
        %1560 = vmatpush1.xpose.msra.mxu0 0.0
        %1561 = vmatprep.subr.mxu0 0.0
        %1562 = vmatpush1.xpose.msra.mxu0 0.0
        %1563 = vmatprep.subr.mxu0 0.0
        %1564 = vmatpush1.xpose.msra.mxu0 0.0
        %1565 = vmatprep.subr.mxu0 0.0
        %1566 = vmatpush1.xpose.msra.mxu0 0.0
        %1567 = vmatprep.subr.mxu0 0.0
        %1568 = vmatpush1.xpose.msra.mxu0 0.0
        %1569 = vmatprep.subr.mxu0 0.0
        %1570 = vmatpush1.xpose.msra.mxu0 0.0
        %1571 = vmatprep.subr.mxu0 0.0
        %1572 = vmatpush1.xpose.msra.mxu0 0.0
        %1573 = vmatprep.subr.mxu0 0.0
        %1574 = vmatpush1.xpose.msra.mxu0 0.0
        %1575 = vmatprep.mubr.f32.mxu0 0.0
        %1576 = vmatmul.mubr.f32.gmra.mrb[0].mxu0 %v1507
        %v1577 = vpop.f32.mrb[0].mxu0
        %v1578 = vadd.f32 0.0, %v1577
        %v1579 = vpop.f32.mrb[0].mxu0
        %1580 = vdwg.mxu0
        %v1581 = vmul.f32 %v1578, 0.35355338
        %v1582 = vsel %vm785, %v1581, -inf
        %1583 = vmax.xlane.f32.xlu0 %v1582
        %v1584 = vpop.xlane.xlu0 %1583
        %v1585 = vsub.f32 %v1581, %v1584
        %v1586 = vmul.f32 %v1585, 1.442695
        %v1587 = vpow.pop %v1586
        %v1588 = vsel %vm785, %v1587, 0.0
        %1589 = vadd.xlane.f32.xlu0 %v1588
        %v1590 = vpop.xlane.xlu0 %1589
        %v1591 = vrcp.pop %v1590
        %v1592 = vmul.f32 %v1587, %v1591
        %1593 = vrot.lane.b32.xlu0 %v782, 104
        %v1594 = vpop.permute.xlu0 %1593
        %v1597 = vsel %vm785, %v1592, 0
        %1599 = vmatprep.subr.mxu0 0.0
        %1600 = vmatpush1.msra.mxu0 %v1594
        %1601 = vmatprep.subr.mxu0 0.0
        %1602 = vmatpush1.msra.mxu0 0.0
        %1603 = vmatprep.subr.mxu0 0.0
        %1604 = vmatpush1.msra.mxu0 0.0
        %1605 = vmatprep.subr.mxu0 0.0
        %1606 = vmatpush1.msra.mxu0 0.0
        %1607 = vmatprep.subr.mxu0 0.0
        %1608 = vmatpush1.msra.mxu0 0.0
        %1609 = vmatprep.subr.mxu0 0.0
        %1610 = vmatpush1.msra.mxu0 0.0
        %1611 = vmatprep.subr.mxu0 0.0
        %1612 = vmatpush1.msra.mxu0 0.0
        %1613 = vmatprep.subr.mxu0 0.0
        %1614 = vmatpush1.msra.mxu0 0.0
        %1615 = vmatprep.subr.mxu0 0.0
        %1616 = vmatpush1.msra.mxu0 0.0
        %1617 = vmatprep.subr.mxu0 0.0
        %1618 = vmatpush1.msra.mxu0 0.0
        %1619 = vmatprep.subr.mxu0 0.0
        %1620 = vmatpush1.msra.mxu0 0.0
        %1621 = vmatprep.subr.mxu0 0.0
        %1622 = vmatpush1.msra.mxu0 0.0
        %1623 = vmatprep.subr.mxu0 0.0
        %1624 = vmatpush1.msra.mxu0 0.0
        %1625 = vmatprep.subr.mxu0 0.0
        %1626 = vmatpush1.msra.mxu0 0.0
        %1627 = vmatprep.subr.mxu0 0.0
        %1628 = vmatpush1.msra.mxu0 0.0
        %1629 = vmatprep.subr.mxu0 0.0
        %1630 = vmatpush1.msra.mxu0 0.0
        %1631 = vmatprep.subr.mxu0 0.0
        %1632 = vmatpush1.msra.mxu0 0.0
        %1633 = vmatprep.subr.mxu0 0.0
        %1634 = vmatpush1.msra.mxu0 0.0
        %1635 = vmatprep.subr.mxu0 0.0
        %1636 = vmatpush1.msra.mxu0 0.0
        %1637 = vmatprep.subr.mxu0 0.0
        %1638 = vmatpush1.msra.mxu0 0.0
        %1639 = vmatprep.subr.mxu0 0.0
        %1640 = vmatpush1.msra.mxu0 0.0
        %1641 = vmatprep.subr.mxu0 0.0
        %1642 = vmatpush1.msra.mxu0 0.0
        %1643 = vmatprep.subr.mxu0 0.0
        %1644 = vmatpush1.msra.mxu0 0.0
        %1645 = vmatprep.subr.mxu0 0.0
        %1646 = vmatpush1.msra.mxu0 0.0
        %1647 = vmatprep.subr.mxu0 0.0
        %1648 = vmatpush1.msra.mxu0 0.0
        %1649 = vmatprep.subr.mxu0 0.0
        %1650 = vmatpush1.msra.mxu0 0.0
        %1651 = vmatprep.subr.mxu0 0.0
        %1652 = vmatpush1.msra.mxu0 0.0
        %1653 = vmatprep.subr.mxu0 0.0
        %1654 = vmatpush1.msra.mxu0 0.0
        %1655 = vmatprep.subr.mxu0 0.0
        %1656 = vmatpush1.msra.mxu0 0.0
        %1657 = vmatprep.subr.mxu0 0.0
        %1658 = vmatpush1.msra.mxu0 0.0
        %1659 = vmatprep.subr.mxu0 0.0
        %1660 = vmatpush1.msra.mxu0 0.0
        %1661 = vmatprep.subr.mxu0 0.0
        %1662 = vmatpush1.msra.mxu0 0.0
        %1663 = vmatprep.mubr.f32.mxu0 0.0
        %1664 = vmatmul.mubr.f32.gmra.mrb[0].mxu0 %v1597
        %v1665 = vpop.f32.mrb[0].mxu0
        %v1666 = vadd.f32 0.0, %v1665
        %v1667 = vpop.f32.mrb[0].mxu0
        %1668 = vdwg.mxu0
        %v1669 = vld [vmem:[%s9 + $0x18] sm:$0xff]
        %v1671 = vsel %vm785, %v1666, 0
        %1673 = vmatprep.subr.mxu0 0.0
        %1674 = vmatpush1.msra.mxu0 %v1669
        %1675 = vmatprep.subr.mxu0 0.0
        %1676 = vmatpush1.msra.mxu0 0.0
        %1677 = vmatprep.subr.mxu0 0.0
        %1678 = vmatpush1.msra.mxu0 0.0
        %1679 = vmatprep.subr.mxu0 0.0
        %1680 = vmatpush1.msra.mxu0 0.0
        %1681 = vmatprep.subr.mxu0 0.0
        %1682 = vmatpush1.msra.mxu0 0.0
        %1683 = vmatprep.subr.mxu0 0.0
        %1684 = vmatpush1.msra.mxu0 0.0
        %1685 = vmatprep.subr.mxu0 0.0
        %1686 = vmatpush1.msra.mxu0 0.0
        %1687 = vmatprep.subr.mxu0 0.0
        %1688 = vmatpush1.msra.mxu0 0.0
        %1689 = vmatprep.subr.mxu0 0.0
        %1690 = vmatpush1.msra.mxu0 0.0
        %1691 = vmatprep.subr.mxu0 0.0
        %1692 = vmatpush1.msra.mxu0 0.0
        %1693 = vmatprep.subr.mxu0 0.0
        %1694 = vmatpush1.msra.mxu0 0.0
        %1695 = vmatprep.subr.mxu0 0.0
        %1696 = vmatpush1.msra.mxu0 0.0
        %1697 = vmatprep.subr.mxu0 0.0
        %1698 = vmatpush1.msra.mxu0 0.0
        %1699 = vmatprep.subr.mxu0 0.0
        %1700 = vmatpush1.msra.mxu0 0.0
        %1701 = vmatprep.subr.mxu0 0.0
        %1702 = vmatpush1.msra.mxu0 0.0
        %1703 = vmatprep.subr.mxu0 0.0
        %1704 = vmatpush1.msra.mxu0 0.0
        %1705 = vmatprep.subr.mxu0 0.0
        %1706 = vmatpush1.msra.mxu0 0.0
        %1707 = vmatprep.subr.mxu0 0.0
        %1708 = vmatpush1.msra.mxu0 0.0
        %1709 = vmatprep.subr.mxu0 0.0
        %1710 = vmatpush1.msra.mxu0 0.0
        %1711 = vmatprep.subr.mxu0 0.0
        %1712 = vmatpush1.msra.mxu0 0.0
        %1713 = vmatprep.subr.mxu0 0.0
        %1714 = vmatpush1.msra.mxu0 0.0
        %1715 = vmatprep.subr.mxu0 0.0
        %1716 = vmatpush1.msra.mxu0 0.0
        %1717 = vmatprep.subr.mxu0 0.0
        %1718 = vmatpush1.msra.mxu0 0.0
        %1719 = vmatprep.subr.mxu0 0.0
        %1720 = vmatpush1.msra.mxu0 0.0
        %1721 = vmatprep.subr.mxu0 0.0
        %1722 = vmatpush1.msra.mxu0 0.0
        %1723 = vmatprep.subr.mxu0 0.0
        %1724 = vmatpush1.msra.mxu0 0.0
        %1725 = vmatprep.subr.mxu0 0.0
        %1726 = vmatpush1.msra.mxu0 0.0
        %1727 = vmatprep.subr.mxu0 0.0
        %1728 = vmatpush1.msra.mxu0 0.0
        %1729 = vmatprep.subr.mxu0 0.0
        %1730 = vmatpush1.msra.mxu0 0.0
        %1731 = vmatprep.subr.mxu0 0.0
        %1732 = vmatpush1.msra.mxu0 0.0
        %1733 = vmatprep.subr.mxu0 0.0
        %1734 = vmatpush1.msra.mxu0 0.0
        %1735 = vmatprep.subr.mxu0 0.0
        %1736 = vmatpush1.msra.mxu0 0.0
        %1737 = vmatprep.mubr.f32.mxu0 0.0
        %1738 = vmatmul.mubr.f32.gmra.mrb[0].mxu0 %v1671
        %v1739 = vpop.f32.mrb[0].mxu0
        %v1740 = vadd.f32 0.0, %v1739
        %v1741 = vpop.f32.mrb[0].mxu0
        %1742 = vdwg.mxu0
        %v1743 = vadd.f32 %v1502, %v1740
        %v1744 = vld [vmem:[%s10] sm:$0x1]
        %v1746 = vlaneseq
        %v1747 = vshrl.u32 %v1746, 7
        %v1748 = vsub.s32 0, %v1747
        %v1749 = vrot.slane %v1744, %v1748
        %v1751 = vadd.f32 %v1743, %v1749
        %1752 = vst.msk [vmem:[%s528] sm:$0xff] %vm543, %v1751
        %s1753 = sand.u32 %s287, 1
        %s1754 = scalar_lea.sflag [#allocation4], %s1753
        %s1755 = sand.u32 %s287, 1
        %s1756 = smul.addr %s1755, 8
        %s1757 = scalar_lea.vmem [#allocation14], %s1756
        // Predicated region
        $region93: #{tpu_custom_call.1} parent=63 // pred_check
          %p1758 = pneg %p297
        $region94: #{tpu_custom_call.1} parent=63 // pred_check_branch
          %1760 = sbr.rel (%p1758) target = $region96
        $region95: #{tpu_custom_call.1} parent=63 // pred_region
          %s1762 = ssub.s32 128, 128
          %1763 = vsyncadd %s1754, %s1762
          %s1764 = smul.addr %s33, 128
          %s1765 = scalar_lea.hbm %s11, %s1764
          %s1767 = sshll.u32 %s1757, 4
          %s1768 = int_to_ptr.vmem [resolvable:$true] %s1767
          %1770 = dma.vmem_to_hbm [thread:$0]  %s1768, 128, %s1765, %s1754
        $region96: #{tpu_custom_call.1} parent=63 // pred_fallthru
          _
      $region64: #{tpu_custom_call.1} parent=5 // pred_fallthru
        _
      %p1771 = scmp.le.s32.totalorder 2, %s28
      // Predicated region
      $region97: #{tpu_custom_call.1} parent=5 // pred_check
        %p1772 = pneg %p1771
      $region98: #{tpu_custom_call.1} parent=5 // pred_check_branch
        %1774 = sbr.rel (%p1772) target = $region100
      $region99: #{tpu_custom_call.1} parent=5 // pred_region
        %s1775 = ssub.s32 %s28, 2
        // Predicated region
        $region101: #{tpu_custom_call.1} parent=99 // pred_check
          %p1776 = pneg %p303
        $region102: #{tpu_custom_call.1} parent=99 // pred_check_branch
          %1778 = sbr.rel (%p1776) target = $region104
        $region103: #{tpu_custom_call.1} parent=99 // pred_region
          %s1779 = sand.u32 %s288, 1
          %s1780 = scalar_lea.sflag [#allocation4], %s1779
          %s1781 = sand.u32 %s288, 1
          %s1782 = smul.addr %s1781, 8
          %s1783 = scalar_lea.vmem [#allocation14], %s1782
          %1784 = dma.done %s1780, 128
        $region104: #{tpu_custom_call.1} parent=99 // pred_fallthru
          _
      $region100: #{tpu_custom_call.1} parent=5 // pred_fallthru
        _
    $region6: #{tpu_custom_call.1} parent=1 // loop_footer
      %s32 = sadd.s32 1, %s28
    $region7: #{tpu_custom_call.1} parent=1 // loop_footer_branch
      %27 = sbr.rel target = $region3
    $region8: #{tpu_custom_call.1} parent=1 // loop_exit
      _
    %1785 = vsyncpa [#allocation3], 1
    %s1786 = scalar_lea.sflag [#allocation3], 1
    %1787 = vsyncpa %s1786, 1
    %1788 = vsyncpa [#allocation6], 1
    %s1789 = scalar_lea.sflag [#allocation6], 1
    %1790 = vsyncpa %s1789, 1
    %1791 = vsyncpa [#allocation9], 1
    %1792 = vsyncpa [#allocation12], 1
    %1793 = vsyncpa [#allocation4], 1
    %s1794 = scalar_lea.sflag [#allocation4], 1
    %1795 = vsyncpa %s1794, 1

</llo_original>
